<compile_context>
chip_gen: v5e
topology: v5e:2x2
jax: 0.10.0
libtpu: 0.0.40
codegen_flags: <defaults>
</compile_context>

<pallas_src>
import functools

import jax
import jax.numpy as jnp
import numpy as np
from jax.experimental import pallas as pl
from jax.experimental.pallas import tpu as pltpu

NEG_SLOPE = 0.2     # cfg.negative_slope
NUM_HEADS = 4       # cfg.num_heads
OUTPUT_DIM = 32     # cfg.output_dim  -> per-head out_features F = 8


def gat_kernel(x_ref, xt_ref, dg_ref, sg_ref, au_ref, av_ref, cu_ref, cv_ref,
               bp_ref, dp_ref, wprojT_ref, ball_ref,
               out_ref, dattn_ref, sattn_ref, acc_ref,
               *, tq, neg_slope):
    q = pl.program_id(0)                       # query-tile index  ("parallel")
    h = pl.program_id(1)                       # head index        ("arbitrary")
    i0 = pl.multiple_of(q * tq, tq)

    x_full = x_ref[...]                        # (N, Fin)
    x_tile = x_ref[pl.ds(i0, tq), :]           # (TQ, Fin)

    # Initialize the accumulator with residual projection + all bias terms.
    @pl.when(h == 0)
    def _init():
        acc_ref[...] = (
            jnp.dot(x_tile, wprojT_ref[...], preferred_element_type=jnp.float32)
            + ball_ref[...])

    # Attention logits for head h over this query tile:
    #   logits[i, j] = f1_h[j] + f2_h[i]   (weight_u / weight_v folded into x).
    f1 = jnp.sum(xt_ref[...] * au_ref[h], axis=0, keepdims=True) + cu_ref[h]   # (1, N)
    f2 = jnp.sum(x_tile * av_ref[h], axis=1, keepdims=True) + cv_ref[h]        # (TQ, 1)
    logits = f2 + f1                                                           # (TQ, N)
    w = jnp.where(logits >= 0.0, logits, neg_slope * logits)                   # LeakyReLU

    def masked_softmax(graph):
        # Emulates torch.sparse.softmax over the nonzero entries of w*graph.
        # NOTE: an edge whose leaky_relu(logit) is exactly 0 is dropped, exactly
        # like to_sparse() dropping explicit zeros (faithful to the reference).
        mw = w * graph
        mask = mw != 0.0
        m = jnp.max(jnp.where(mask, mw, -1e30), axis=1, keepdims=True)
        e = jnp.where(mask, jnp.exp(mw - m), 0.0)
        s = jnp.sum(e, axis=1, keepdims=True)
        inv = pl.reciprocal(jnp.maximum(s, 1e-30), approx=True)   # EUP, not VPU divide
        return jnp.where(s > 0.0, e * inv, 0.0)

    d_attn = masked_softmax(dg_ref[...])       # (TQ, N)
    s_attn = masked_softmax(sg_ref[...])       # (TQ, N)
    dattn_ref[...] = d_attn                    # single lane-dense store per block
    sattn_ref[...] = s_attn

    # Reassociated output path:
    #   P_s_h = score_h @ WcatT_S_h  ==  x @ bp[2h]   + dp[2h]      (N, HF)
    #   P_d_h = score_h @ WcatT_D_h  ==  x @ bp[2h+1] + dp[2h+1]    (N, HF)
    # so the big matmuls are (TQ, N) @ (N, HF) with a 32-wide output.
    p_s = jnp.dot(x_full, bp_ref[2 * h], preferred_element_type=jnp.float32) + dp_ref[2 * h]
    p_d = jnp.dot(x_full, bp_ref[2 * h + 1], preferred_element_type=jnp.float32) + dp_ref[2 * h + 1]

    acc_ref[...] += (jnp.dot(s_attn, p_s, preferred_element_type=jnp.float32)
                     + jnp.dot(d_attn, p_d, preferred_element_type=jnp.float32))

    @pl.when(h == pl.num_programs(1) - 1)
    def _finalize():
        out_ref[...] = acc_ref[...]


def _choose_tile(n, max_tq):
    """Largest multiple-of-8 divisor of n that is <= max_tq (else a single tile)."""
    if n <= max_tq or n % 8 != 0:
        return n
    best = n
    for t in range(8, max_tq + 1, 8):
        if n % t == 0:
            best = t
    return best


def gat_multiheads(x, params, dgraph, sgraph, *, num_heads=NUM_HEADS,
                   output_dim=OUTPUT_DIM, neg_slope=NEG_SLOPE, max_tq=256):
    x = jnp.asarray(x, jnp.float32)
    dgraph = jnp.asarray(dgraph, jnp.float32)
    sgraph = jnp.asarray(sgraph, jnp.float32)
    N, fin = x.shape
    H = num_heads
    assert output_dim % H == 0
    F = output_dim // H
    HF = H * F

    Wlin = jnp.asarray(params["Wlin"], jnp.float32)    # (HF, Fin)
    blin = jnp.asarray(params["blin"], jnp.float32)    # (HF,)
    wu = jnp.asarray(params["wu"], jnp.float32)        # (H, F)
    wv = jnp.asarray(params["wv"], jnp.float32)        # (H, F)
    Wcat = jnp.asarray(params["Wcat"], jnp.float32)    # (HF, 2*HF)
    bcat = jnp.asarray(params["bcat"], jnp.float32)    # (HF,)
    bias = jnp.asarray(params["bias"], jnp.float32)    # (1, HF)
    Wproj = jnp.asarray(params["Wproj"], jnp.float32)  # (HF, Fin)
    bproj = jnp.asarray(params["bproj"], jnp.float32)  # (HF,)
    assert Wlin.shape == (HF, fin) and Wcat.shape == (HF, 2 * HF)

    # nn.Linear(in, H*F) columns are head-major (col = h*F + f) — relied on below.
    Wlin_h = Wlin.reshape(H, F, fin)
    blin_h = blin.reshape(H, F)
    WcatT = Wcat.T                                     # (2*HF, HF); [0:HF]->S half, [HF:]->D half
    WcatT_S = WcatT[:HF].reshape(H, F, HF)
    WcatT_D = WcatT[HF:].reshape(H, F, HF)

    # Fold weight_u / weight_v through the input projection:
    #   f1_h = x @ au_h + cu_h ,  f2_h = x @ av_h + cv_h
    au = jnp.einsum("hf,hfk->hk", wu, Wlin_h)          # (H, Fin)
    av = jnp.einsum("hf,hfk->hk", wv, Wlin_h)          # (H, Fin)
    cu = jnp.einsum("hf,hf->h", wu, blin_h)            # (H,)
    cv = jnp.einsum("hf,hf->h", wv, blin_h)            # (H,)
    au3 = au[:, :, None]        # (H, Fin, 1)  column per head (for sublane reduce vs x^T)
    av3 = av[:, None, :]        # (H, 1, Fin)  row per head (for lane reduce vs x tile)
    cu3 = cu[:, None, None]     # (H, 1, 1)
    cv3 = cv[:, None, None]     # (H, 1, 1)

    # Fold the per-head score slice and weight_cat halves:
    #   P_s_h = x @ bp[2h]   + dp[2h],   P_d_h = x @ bp[2h+1] + dp[2h+1]
    b_s = jnp.einsum("hfk,hfm->hkm", Wlin_h, WcatT_S)  # (H, Fin, HF)
    b_d = jnp.einsum("hfk,hfm->hkm", Wlin_h, WcatT_D)  # (H, Fin, HF)
    d_s = jnp.einsum("hf,hfm->hm", blin_h, WcatT_S)    # (H, HF)
    d_d = jnp.einsum("hf,hfm->hm", blin_h, WcatT_D)    # (H, HF)
    bp = jnp.stack([b_s, b_d], axis=1).reshape(2 * H, fin, HF)
    dp = jnp.stack([d_s, d_d], axis=1).reshape(2 * H, 1, HF)

    wprojT = Wproj.T                                   # (Fin, HF)
    ball = (bcat + bproj)[None, :] + bias              # (1, HF): bcat + bias + bproj
    xT = x.T                                           # (Fin, N)

    tq = _choose_tile(N, max_tq)
    nq = N // tq

    kernel = functools.partial(gat_kernel, tq=tq, neg_slope=neg_slope)

    in_specs = [
        pl.BlockSpec((N, fin), lambda q, h: (0, 0)),            # x (full, small)
        pl.BlockSpec((fin, N), lambda q, h: (0, 0)),            # x^T (full, small)
        pl.BlockSpec((tq, N), lambda q, h: (q, 0)),             # Dgraph row-tile
        pl.BlockSpec((tq, N), lambda q, h: (q, 0)),             # Sgraph row-tile
        pl.BlockSpec((H, fin, 1), lambda q, h: (0, 0, 0)),      # au3
        pl.BlockSpec((H, 1, fin), lambda q, h: (0, 0, 0)),      # av3
        pl.BlockSpec((H, 1, 1), lambda q, h: (0, 0, 0)),        # cu3
        pl.BlockSpec((H, 1, 1), lambda q, h: (0, 0, 0)),        # cv3
        pl.BlockSpec((2 * H, fin, HF), lambda q, h: (0, 0, 0)), # bp
        pl.BlockSpec((2 * H, 1, HF), lambda q, h: (0, 0, 0)),   # dp
        pl.BlockSpec((fin, HF), lambda q, h: (0, 0)),           # Wproj^T
        pl.BlockSpec((1, HF), lambda q, h: (0, 0)),             # combined biases
    ]
    out_specs = (
        pl.BlockSpec((tq, HF), lambda q, h: (q, 0)),            # out (constant over h)
        pl.BlockSpec((None, tq, N), lambda q, h: (h, q, 0)),    # D attention (lane-dense)
        pl.BlockSpec((None, tq, N), lambda q, h: (h, q, 0)),    # S attention (lane-dense)
    )
    out_shapes = (
        jax.ShapeDtypeStruct((N, HF), jnp.float32),
        jax.ShapeDtypeStruct((H, N, N), jnp.float32),
        jax.ShapeDtypeStruct((H, N, N), jnp.float32),
    )

    return pl.pallas_call(
        kernel,
        out_shape=out_shapes,
        grid_spec=pltpu.PrefetchScalarGridSpec(
            num_scalar_prefetch=0,
            grid=(nq, H),
            in_specs=in_specs,
            out_specs=out_specs,
            scratch_shapes=[pltpu.VMEM((tq, HF), jnp.float32)],
        ),
        compiler_params=pltpu.CompilerParams(
            dimension_semantics=("parallel", "arbitrary"),
            vmem_limit_bytes=32 * 1024 * 1024,
        ),
    )(x, xT, dgraph, sgraph, au3, av3, cu3, cv3, bp, dp, wprojT, ball)


def reference(x, Wlin, blin, wu, wv, Wcat, bcat, bias, Wproj, bproj, Dg, Sg,
              H, F, neg_slope):
    N = x.shape[0]
    HF = H * F
    score = x @ Wlin.T + blin
    score = score.reshape(N, H, F).transpose(1, 0, 2)          # (H, N, F)
    f1 = jnp.einsum("hnf,hf->hn", score, wu)[:, None, :]       # (H, 1, N)
    f2 = jnp.einsum("hnf,hf->hn", score, wv)[:, :, None]       # (H, N, 1)
    logits = f1 + f2
    w = jnp.where(logits >= 0, logits, neg_slope * logits)

    def sm(g):
        mw = w * g[None]
        mask = mw != 0
        m = jnp.max(jnp.where(mask, mw, -1e30), axis=2, keepdims=True)
        e = jnp.where(mask, jnp.exp(mw - m), 0.0)
        s = jnp.sum(e, axis=2, keepdims=True)
        return jnp.where(s > 0, e / s, 0.0)

    Da, Sa = sm(Dg), sm(Sg)
    Dsup = jnp.einsum("hij,hjf->hif", Da, score).transpose(1, 0, 2).reshape(N, HF)
    Ssup = jnp.einsum("hij,hjf->hif", Sa, score).transpose(1, 0, 2).reshape(N, HF)
    cat = jnp.concatenate([Ssup, Dsup], axis=1)
    out = cat @ Wcat.T + bcat + bias + x @ Wproj.T + bproj
    return out, Da, Sa


if __name__ == "__main__":
    N, Fin = 128, 16
    H = NUM_HEADS
    F = OUTPUT_DIM // NUM_HEADS
    HF = H * F

    key = jax.random.PRNGKey(0)
    ks = jax.random.split(key, 12)

    def xavier(k, shape, fan_in, fan_out):
        gain = float(np.sqrt(2.0))               # calculate_gain('relu')
        bound = gain * float(np.sqrt(6.0 / (fan_in + fan_out)))
        return jax.random.uniform(k, shape, jnp.float32, -bound, bound)

    Wlin = xavier(ks[0], (HF, Fin), Fin, HF)
    blin = 0.1 * jax.random.normal(ks[1], (HF,), jnp.float32)
    wu = xavier(ks[2], (H, F), F, 1)
    wv = xavier(ks[3], (H, F), F, 1)
    Wcat = xavier(ks[4], (HF, 2 * HF), 2 * HF, HF)
    bcat = 0.1 * jax.random.normal(ks[5], (HF,), jnp.float32)
    bias = xavier(ks[6], (1, HF), 1, HF)
    Wproj = xavier(ks[7], (HF, Fin), Fin, HF)
    bproj = 0.1 * jax.random.normal(ks[8], (HF,), jnp.float32)

    x = jax.random.normal(ks[9], (N, Fin), jnp.float32)
    Dg = (jax.random.uniform(ks[10], (N, N)) < 0.3).astype(jnp.float32)
    Dg = jnp.maximum(Dg, jnp.eye(N, dtype=jnp.float32))
    Sg = (jax.random.uniform(ks[11], (N, N)) < 0.3).astype(jnp.float32)
    Sg = jnp.maximum(Sg, jnp.eye(N, dtype=jnp.float32))

    params = dict(Wlin=Wlin, blin=blin, wu=wu, wv=wv, Wcat=Wcat, bcat=bcat,
                  bias=bias, Wproj=Wproj, bproj=bproj)

    out, d_attn, s_attn = gat_multiheads(x, params, Dg, Sg, max_tq=64)
    jax.block_until_ready((out, d_attn, s_attn))

    ref_out, ref_da, ref_sa = reference(x, Wlin, blin, wu, wv, Wcat, bcat,
                                        bias, Wproj, bproj, Dg, Sg,
                                        H, F, NEG_SLOPE)
    np.testing.assert_allclose(np.asarray(d_attn), np.asarray(ref_da),
                               rtol=1e-2, atol=1e-3)
    np.testing.assert_allclose(np.asarray(s_attn), np.asarray(ref_sa),
                               rtol=1e-2, atol=1e-3)
    np.testing.assert_allclose(np.asarray(out), np.asarray(ref_out),
                               rtol=1e-2, atol=1e-2)
    print("KERNEL_OK")
</pallas_src>

<mosaic_0001>
module attributes {stable_mosaic.version = 11 : i64} {
  func.func @gat_kernel(%arg0: i32, %arg1: i32, %arg2: memref<128x16xf32, #tpu.memory_space<vmem>>, %arg3: memref<16x128xf32, #tpu.memory_space<vmem>>, %arg4: memref<64x128xf32, #tpu.memory_space<vmem>>, %arg5: memref<64x128xf32, #tpu.memory_space<vmem>>, %arg6: memref<4x16x1xf32, #tpu.memory_space<vmem>>, %arg7: memref<4x1x16xf32, #tpu.memory_space<vmem>>, %arg8: memref<4x1x1xf32, #tpu.memory_space<vmem>>, %arg9: memref<4x1x1xf32, #tpu.memory_space<vmem>>, %arg10: memref<8x16x32xf32, #tpu.memory_space<vmem>>, %arg11: memref<8x1x32xf32, #tpu.memory_space<vmem>>, %arg12: memref<16x32xf32, #tpu.memory_space<vmem>>, %arg13: memref<1x32xf32, #tpu.memory_space<vmem>>, %arg14: memref<64x32xf32, #tpu.memory_space<vmem>>, %arg15: memref<1x64x128xf32, #tpu.memory_space<vmem>>, %arg16: memref<1x64x128xf32, #tpu.memory_space<vmem>>, %arg17: memref<64x32xf32, #tpu.memory_space<vmem>>) attributes {dimension_semantics = [#tpu.dimension_semantics<parallel>, #tpu.dimension_semantics<arbitrary>], iteration_bounds = array<i64: 2, 4>, scalar_prefetch = 0 : i64, scratch_operands = 1 : i64, tpu.core_type = #tpu.core_type<tc>, window_params = [{pipeline_mode = #tpu.pipeline_mode<synchronous>, transform_indices = @transform_0, window_bounds = array<i64: 128, 16>}, {pipeline_mode = #tpu.pipeline_mode<synchronous>, transform_indices = @transform_1, window_bounds = array<i64: 16, 128>}, {transform_indices = @transform_2, window_bounds = array<i64: 64, 128>}, {transform_indices = @transform_3, window_bounds = array<i64: 64, 128>}, {pipeline_mode = #tpu.pipeline_mode<synchronous>, transform_indices = @transform_4, window_bounds = array<i64: 4, 16, 1>}, {pipeline_mode = #tpu.pipeline_mode<synchronous>, transform_indices = @transform_5, window_bounds = array<i64: 4, 1, 16>}, {pipeline_mode = #tpu.pipeline_mode<synchronous>, transform_indices = @transform_6, window_bounds = array<i64: 4, 1, 1>}, {pipeline_mode = #tpu.pipeline_mode<synchronous>, transform_indices = @transform_7, window_bounds = array<i64: 4, 1, 1>}, {pipeline_mode = #tpu.pipeline_mode<synchronous>, transform_indices = @transform_8, window_bounds = array<i64: 8, 16, 32>}, {pipeline_mode = #tpu.pipeline_mode<synchronous>, transform_indices = @transform_9, window_bounds = array<i64: 8, 1, 32>}, {pipeline_mode = #tpu.pipeline_mode<synchronous>, transform_indices = @transform_10, window_bounds = array<i64: 16, 32>}, {pipeline_mode = #tpu.pipeline_mode<synchronous>, transform_indices = @transform_11, window_bounds = array<i64: 1, 32>}, {transform_indices = @transform_12, window_bounds = array<i64: 64, 32>}, {transform_indices = @transform_13, window_bounds = array<i64: 1, 64, 128>}, {transform_indices = @transform_14, window_bounds = array<i64: 1, 64, 128>}]} {
    %c64_i32 = arith.constant 64 : i32
    %0 = arith.muli %arg0, %c64_i32 : i32
    %1 = tpu.assume_multiple %0, 64 : i32
    %c0 = arith.constant 0 : index
    %c0_0 = arith.constant 0 : index
    %2 = vector.load %arg2[%c0, %c0_0] : memref<128x16xf32, #tpu.memory_space<vmem>>, vector<128x16xf32>
    %3 = arith.index_cast %1 : i32 to index
    %c0_1 = arith.constant 0 : index
    %4 = vector.load %arg2[%3, %c0_1] : memref<128x16xf32, #tpu.memory_space<vmem>>, vector<64x16xf32>
    %c0_i32 = arith.constant 0 : i32
    %5 = arith.cmpi eq, %arg1, %c0_i32 : i32
    %6 = arith.extui %5 : i1 to i32
    %c0_i32_2 = arith.constant 0 : i32
    %7 = arith.cmpi ne, %6, %c0_i32_2 : i32
    scf.if %7 {
      %c0_63 = arith.constant 0 : index
      %c0_64 = arith.constant 0 : index
      %132 = vector.load %arg12[%c0_63, %c0_64] : memref<16x32xf32, #tpu.memory_space<vmem>>, vector<16x32xf32>
      %cst_65 = arith.constant dense<0.000000e+00> : vector<64x32xf32>
      %133 = tpu.matmul %4, %132, %cst_65 {dimension_numbers = #tpu.dot_dimension_numbers<[1], [0], [0], [1], [0, 0, 1, 1], [], []>} : vector<64x16xf32>, vector<16x32xf32>, vector<64x32xf32> -> vector<64x32xf32>
      %c0_66 = arith.constant 0 : index
      %c0_67 = arith.constant 0 : index
      %134 = vector.load %arg13[%c0_66, %c0_67] : memref<1x32xf32, #tpu.memory_space<vmem>>, vector<1x32xf32>
      %135 = vector.broadcast %134 : vector<1x32xf32> to vector<64x32xf32>
      %136 = arith.addf %133, %135 : vector<64x32xf32>
      %c0_68 = arith.constant 0 : index
      %c0_69 = arith.constant 0 : index
      %137 = vector.load %arg17[%c0_68, %c0_69] : memref<64x32xf32, #tpu.memory_space<vmem>>, vector<64x32xf32>
      tpu.vector_store %arg17[%c0_68, %c0_69], %136 {strides = array<i32>} : memref<64x32xf32, #tpu.memory_space<vmem>>, vector<64x32xf32>,
    } else {
    }
    %c0_3 = arith.constant 0 : index
    %c0_4 = arith.constant 0 : index
    %8 = vector.load %arg3[%c0_3, %c0_4] : memref<16x128xf32, #tpu.memory_space<vmem>>, vector<16x128xf32>
    %9 = arith.index_cast %arg1 : i32 to index
    %c0_5 = arith.constant 0 : index
    %c0_6 = arith.constant 0 : index
    %10 = vector.load %arg6[%9, %c0_5, %c0_6] : memref<4x16x1xf32, #tpu.memory_space<vmem>>, vector<1x16x1xf32>
    %11 = vector.shape_cast %10 : vector<1x16x1xf32> to vector<16x1xf32>
    %12 = vector.broadcast %11 : vector<16x1xf32> to vector<16x128xf32>
    %13 = arith.mulf %8, %12 : vector<16x128xf32>
    %cst = arith.constant dense<0.000000e+00> : vector<128xf32>
    %14 = vector.multi_reduction <add>, %13, %cst [0] : vector<16x128xf32> to vector<128xf32>
    %15 = vector.shape_cast %14 : vector<128xf32> to vector<1x128xf32>
    %16 = arith.index_cast %arg1 : i32 to index
    %c0_7 = arith.constant 0 : index
    %c0_8 = arith.constant 0 : index
    %17 = vector.load %arg8[%16, %c0_7, %c0_8] : memref<4x1x1xf32, #tpu.memory_space<vmem>>, vector<1x1x1xf32>
    %18 = vector.shape_cast %17 : vector<1x1x1xf32> to vector<1x1xf32>
    %19 = vector.broadcast %18 : vector<1x1xf32> to vector<1x128xf32>
    %20 = arith.addf %15, %19 : vector<1x128xf32>
    %21 = arith.index_cast %arg1 : i32 to index
    %c0_9 = arith.constant 0 : index
    %c0_10 = arith.constant 0 : index
    %22 = vector.load %arg7[%21, %c0_9, %c0_10] : memref<4x1x16xf32, #tpu.memory_space<vmem>>, vector<1x1x16xf32>
    %23 = vector.shape_cast %22 : vector<1x1x16xf32> to vector<1x16xf32>
    %24 = vector.broadcast %23 : vector<1x16xf32> to vector<64x16xf32>
    %25 = arith.mulf %4, %24 : vector<64x16xf32>
    %cst_11 = arith.constant dense<0.000000e+00> : vector<64xf32>
    %26 = vector.multi_reduction <add>, %25, %cst_11 [1] : vector<64x16xf32> to vector<64xf32>
    %27 = vector.shape_cast %26 : vector<64xf32> to vector<64x1xf32>
    %28 = arith.index_cast %arg1 : i32 to index
    %c0_12 = arith.constant 0 : index
    %c0_13 = arith.constant 0 : index
    %29 = vector.load %arg9[%28, %c0_12, %c0_13] : memref<4x1x1xf32, #tpu.memory_space<vmem>>, vector<1x1x1xf32>
    %30 = vector.shape_cast %29 : vector<1x1x1xf32> to vector<1x1xf32>
    %31 = vector.broadcast %30 : vector<1x1xf32> to vector<64x1xf32>
    %32 = arith.addf %27, %31 : vector<64x1xf32>
    %33 = vector.broadcast %32 : vector<64x1xf32> to vector<64x128xf32>
    %34 = vector.broadcast %20 : vector<1x128xf32> to vector<64x128xf32>
    %35 = arith.addf %33, %34 : vector<64x128xf32>
    %cst_14 = arith.constant 0.000000e+00 : f32
    %36 = vector.broadcast %cst_14 : f32 to vector<64x128xf32>
    %37 = arith.cmpf oge, %35, %36 : vector<64x128xf32>
    %cst_15 = arith.constant 2.000000e-01 : f32
    %38 = vector.broadcast %cst_15 : f32 to vector<64x128xf32>
    %39 = arith.mulf %38, %35 : vector<64x128xf32>
    %40 = arith.select %37, %35, %39 : vector<64x128xi1>, vector<64x128xf32>
    %c0_16 = arith.constant 0 : index
    %c0_17 = arith.constant 0 : index
    %41 = vector.load %arg4[%c0_16, %c0_17] : memref<64x128xf32, #tpu.memory_space<vmem>>, vector<64x128xf32>
    %42 = arith.mulf %40, %41 : vector<64x128xf32>
    %cst_18 = arith.constant 0.000000e+00 : f32
    %43 = vector.broadcast %cst_18 : f32 to vector<64x128xf32>
    %44 = arith.cmpf one, %42, %43 : vector<64x128xf32>
    %cst_19 = arith.constant -1.000000e+30 : f32
    %45 = vector.broadcast %cst_19 : f32 to vector<64x128xf32>
    %46 = arith.select %44, %42, %45 : vector<64x128xi1>, vector<64x128xf32>
    %cst_20 = arith.constant dense<0xFF800000> : vector<64xf32>
    %47 = vector.multi_reduction <maximumf>, %46, %cst_20 [1] : vector<64x128xf32> to vector<64xf32>
    %48 = vector.shape_cast %47 : vector<64xf32> to vector<64x1xf32>
    %49 = vector.broadcast %48 : vector<64x1xf32> to vector<64x128xf32>
    %50 = arith.subf %42, %49 : vector<64x128xf32>
    %51 = math.exp %50 : vector<64x128xf32>
    %cst_21 = arith.constant 0.000000e+00 : f32
    %52 = vector.broadcast %cst_21 : f32 to vector<64x128xf32>
    %53 = arith.select %44, %51, %52 : vector<64x128xi1>, vector<64x128xf32>
    %cst_22 = arith.constant dense<0.000000e+00> : vector<64xf32>
    %54 = vector.multi_reduction <add>, %53, %cst_22 [1] : vector<64x128xf32> to vector<64xf32>
    %55 = vector.shape_cast %54 : vector<64xf32> to vector<64x1xf32>
    %cst_23 = arith.constant 1.000000e-30 : f32
    %56 = vector.broadcast %cst_23 : f32 to vector<64x1xf32>
    %57 = arith.maximumf %55, %56 : vector<64x1xf32>
    %58 = tpu.reciprocal %57 {approx = true} : vector<64x1xf32> -> vector<64x1xf32>
    %cst_24 = arith.constant 0.000000e+00 : f32
    %59 = vector.broadcast %cst_24 : f32 to vector<64x1xf32>
    %60 = arith.cmpf ogt, %55, %59 : vector<64x1xf32>
    %61 = vector.broadcast %58 : vector<64x1xf32> to vector<64x128xf32>
    %62 = arith.mulf %53, %61 : vector<64x128xf32>
    %cst_25 = arith.constant 0.000000e+00 : f32
    %63 = vector.shape_cast %60 : vector<64x1xi1> to vector<64x1xi1>
    %64 = vector.broadcast %63 : vector<64x1xi1> to vector<64x128xi1>
    %65 = vector.broadcast %cst_25 : f32 to vector<64x128xf32>
    %66 = arith.select %64, %62, %65 : vector<64x128xi1>, vector<64x128xf32>
    %c0_26 = arith.constant 0 : index
    %c0_27 = arith.constant 0 : index
    %67 = vector.load %arg5[%c0_26, %c0_27] : memref<64x128xf32, #tpu.memory_space<vmem>>, vector<64x128xf32>
    %68 = arith.mulf %40, %67 : vector<64x128xf32>
    %cst_28 = arith.constant 0.000000e+00 : f32
    %69 = vector.broadcast %cst_28 : f32 to vector<64x128xf32>
    %70 = arith.cmpf one, %68, %69 : vector<64x128xf32>
    %cst_29 = arith.constant -1.000000e+30 : f32
    %71 = vector.broadcast %cst_29 : f32 to vector<64x128xf32>
    %72 = arith.select %70, %68, %71 : vector<64x128xi1>, vector<64x128xf32>
    %cst_30 = arith.constant dense<0xFF800000> : vector<64xf32>
    %73 = vector.multi_reduction <maximumf>, %72, %cst_30 [1] : vector<64x128xf32> to vector<64xf32>
    %74 = vector.shape_cast %73 : vector<64xf32> to vector<64x1xf32>
    %75 = vector.broadcast %74 : vector<64x1xf32> to vector<64x128xf32>
    %76 = arith.subf %68, %75 : vector<64x128xf32>
    %77 = math.exp %76 : vector<64x128xf32>
    %cst_31 = arith.constant 0.000000e+00 : f32
    %78 = vector.broadcast %cst_31 : f32 to vector<64x128xf32>
    %79 = arith.select %70, %77, %78 : vector<64x128xi1>, vector<64x128xf32>
    %cst_32 = arith.constant dense<0.000000e+00> : vector<64xf32>
    %80 = vector.multi_reduction <add>, %79, %cst_32 [1] : vector<64x128xf32> to vector<64xf32>
    %81 = vector.shape_cast %80 : vector<64xf32> to vector<64x1xf32>
    %cst_33 = arith.constant 1.000000e-30 : f32
    %82 = vector.broadcast %cst_33 : f32 to vector<64x1xf32>
    %83 = arith.maximumf %81, %82 : vector<64x1xf32>
    %84 = tpu.reciprocal %83 {approx = true} : vector<64x1xf32> -> vector<64x1xf32>
    %cst_34 = arith.constant 0.000000e+00 : f32
    %85 = vector.broadcast %cst_34 : f32 to vector<64x1xf32>
    %86 = arith.cmpf ogt, %81, %85 : vector<64x1xf32>
    %87 = vector.broadcast %84 : vector<64x1xf32> to vector<64x128xf32>
    %88 = arith.mulf %79, %87 : vector<64x128xf32>
    %cst_35 = arith.constant 0.000000e+00 : f32
    %89 = vector.shape_cast %86 : vector<64x1xi1> to vector<64x1xi1>
    %90 = vector.broadcast %89 : vector<64x1xi1> to vector<64x128xi1>
    %91 = vector.broadcast %cst_35 : f32 to vector<64x128xf32>
    %92 = arith.select %90, %88, %91 : vector<64x128xi1>, vector<64x128xf32>
    %c0_36 = arith.constant 0 : index
    %c0_37 = arith.constant 0 : index
    %c0_38 = arith.constant 0 : index
    %93 = vector.load %arg15[%c0_36, %c0_37, %c0_38] : memref<1x64x128xf32, #tpu.memory_space<vmem>>, vector<1x64x128xf32>
    %94 = vector.shape_cast %93 : vector<1x64x128xf32> to vector<64x128xf32>
    %95 = vector.shape_cast %66 : vector<64x128xf32> to vector<1x64x128xf32>
    tpu.vector_store %arg15[%c0_36, %c0_37, %c0_38], %95 {strides = array<i32>} : memref<1x64x128xf32, #tpu.memory_space<vmem>>, vector<1x64x128xf32>,
    %c0_39 = arith.constant 0 : index
    %c0_40 = arith.constant 0 : index
    %c0_41 = arith.constant 0 : index
    %96 = vector.load %arg16[%c0_39, %c0_40, %c0_41] : memref<1x64x128xf32, #tpu.memory_space<vmem>>, vector<1x64x128xf32>
    %97 = vector.shape_cast %96 : vector<1x64x128xf32> to vector<64x128xf32>
    %98 = vector.shape_cast %92 : vector<64x128xf32> to vector<1x64x128xf32>
    tpu.vector_store %arg16[%c0_39, %c0_40, %c0_41], %98 {strides = array<i32>} : memref<1x64x128xf32, #tpu.memory_space<vmem>>, vector<1x64x128xf32>,
    %c2_i32 = arith.constant 2 : i32
    %99 = arith.muli %c2_i32, %arg1 : i32
    %100 = arith.index_cast %99 : i32 to index
    %c0_42 = arith.constant 0 : index
    %c0_43 = arith.constant 0 : index
    %101 = vector.load %arg10[%100, %c0_42, %c0_43] : memref<8x16x32xf32, #tpu.memory_space<vmem>>, vector<1x16x32xf32>
    %102 = vector.shape_cast %101 : vector<1x16x32xf32> to vector<16x32xf32>
    %cst_44 = arith.constant dense<0.000000e+00> : vector<128x32xf32>
    %103 = tpu.matmul %2, %102, %cst_44 {dimension_numbers = #tpu.dot_dimension_numbers<[1], [0], [0], [1], [0, 0, 1, 1], [], []>} : vector<128x16xf32>, vector<16x32xf32>, vector<128x32xf32> -> vector<128x32xf32>
    %c2_i32_45 = arith.constant 2 : i32
    %104 = arith.muli %c2_i32_45, %arg1 : i32
    %105 = arith.index_cast %104 : i32 to index
    %c0_46 = arith.constant 0 : index
    %c0_47 = arith.constant 0 : index
    %106 = vector.load %arg11[%105, %c0_46, %c0_47] : memref<8x1x32xf32, #tpu.memory_space<vmem>>, vector<1x1x32xf32>
    %107 = vector.shape_cast %106 : vector<1x1x32xf32> to vector<1x32xf32>
    %108 = vector.broadcast %107 : vector<1x32xf32> to vector<128x32xf32>
    %109 = arith.addf %103, %108 : vector<128x32xf32>
    %c2_i32_48 = arith.constant 2 : i32
    %110 = arith.muli %c2_i32_48, %arg1 : i32
    %c1_i32 = arith.constant 1 : i32
    %111 = arith.addi %110, %c1_i32 : i32
    %112 = arith.index_cast %111 : i32 to index
    %c0_49 = arith.constant 0 : index
    %c0_50 = arith.constant 0 : index
    %113 = vector.load %arg10[%112, %c0_49, %c0_50] : memref<8x16x32xf32, #tpu.memory_space<vmem>>, vector<1x16x32xf32>
    %114 = vector.shape_cast %113 : vector<1x16x32xf32> to vector<16x32xf32>
    %cst_51 = arith.constant dense<0.000000e+00> : vector<128x32xf32>
    %115 = tpu.matmul %2, %114, %cst_51 {dimension_numbers = #tpu.dot_dimension_numbers<[1], [0], [0], [1], [0, 0, 1, 1], [], []>} : vector<128x16xf32>, vector<16x32xf32>, vector<128x32xf32> -> vector<128x32xf32>
    %c2_i32_52 = arith.constant 2 : i32
    %116 = arith.muli %c2_i32_52, %arg1 : i32
    %c1_i32_53 = arith.constant 1 : i32
    %117 = arith.addi %116, %c1_i32_53 : i32
    %118 = arith.index_cast %117 : i32 to index
    %c0_54 = arith.constant 0 : index
    %c0_55 = arith.constant 0 : index
    %119 = vector.load %arg11[%118, %c0_54, %c0_55] : memref<8x1x32xf32, #tpu.memory_space<vmem>>, vector<1x1x32xf32>
    %120 = vector.shape_cast %119 : vector<1x1x32xf32> to vector<1x32xf32>
    %121 = vector.broadcast %120 : vector<1x32xf32> to vector<128x32xf32>
    %122 = arith.addf %115, %121 : vector<128x32xf32>
    %c0_56 = arith.constant 0 : index
    %c0_57 = arith.constant 0 : index
    %123 = vector.load %arg17[%c0_56, %c0_57] : memref<64x32xf32, #tpu.memory_space<vmem>>, vector<64x32xf32>
    %cst_58 = arith.constant dense<0.000000e+00> : vector<64x32xf32>
    %124 = tpu.matmul %92, %109, %cst_58 {dimension_numbers = #tpu.dot_dimension_numbers<[1], [0], [0], [1], [0, 0, 1, 1], [], []>} : vector<64x128xf32>, vector<128x32xf32>, vector<64x32xf32> -> vector<64x32xf32>
    %cst_59 = arith.constant dense<0.000000e+00> : vector<64x32xf32>
    %125 = tpu.matmul %66, %122, %cst_59 {dimension_numbers = #tpu.dot_dimension_numbers<[1], [0], [0], [1], [0, 0, 1, 1], [], []>} : vector<64x128xf32>, vector<128x32xf32>, vector<64x32xf32> -> vector<64x32xf32>
    %126 = arith.addf %124, %125 : vector<64x32xf32>
    %127 = arith.addf %123, %126 : vector<64x32xf32>
    %c0_60 = arith.constant 0 : index
    %c0_61 = arith.constant 0 : index
    %128 = vector.load %arg17[%c0_60, %c0_61] : memref<64x32xf32, #tpu.memory_space<vmem>>, vector<64x32xf32>
    tpu.vector_store %arg17[%c0_60, %c0_61], %127 {strides = array<i32>} : memref<64x32xf32, #tpu.memory_space<vmem>>, vector<64x32xf32>,
    %c3_i32 = arith.constant 3 : i32
    %129 = arith.cmpi eq, %arg1, %c3_i32 : i32
    %130 = arith.extui %129 : i1 to i32
    %c0_i32_62 = arith.constant 0 : i32
    %131 = arith.cmpi ne, %130, %c0_i32_62 : i32
    scf.if %131 {
      %c0_63 = arith.constant 0 : index
      %c0_64 = arith.constant 0 : index
      %132 = vector.load %arg17[%c0_63, %c0_64] : memref<64x32xf32, #tpu.memory_space<vmem>>, vector<64x32xf32>
      %c0_65 = arith.constant 0 : index
      %c0_66 = arith.constant 0 : index
      %133 = vector.load %arg14[%c0_65, %c0_66] : memref<64x32xf32, #tpu.memory_space<vmem>>, vector<64x32xf32>
      tpu.vector_store %arg14[%c0_65, %c0_66], %132 {strides = array<i32>} : memref<64x32xf32, #tpu.memory_space<vmem>>, vector<64x32xf32>,
    } else {
    }
    return
  }
  func.func @transform_0(%arg0: i32, %arg1: i32) -> (i32, i32) {
    %c0_i32 = arith.constant 0 : i32
    %c0_i32_0 = arith.constant 0 : i32
    %c0_i32_1 = arith.constant 0 : i32
    return %c0_i32, %c0_i32_0 : i32, i32
  }
  func.func @transform_1(%arg0: i32, %arg1: i32) -> (i32, i32) {
    %c0_i32 = arith.constant 0 : i32
    %c0_i32_0 = arith.constant 0 : i32
    %c0_i32_1 = arith.constant 0 : i32
    return %c0_i32, %c0_i32_0 : i32, i32
  }
  func.func @transform_2(%arg0: i32, %arg1: i32) -> (i32, i32) {
    %c0_i32 = arith.constant 0 : i32
    %c0_i32_0 = arith.constant 0 : i32
    return %arg0, %c0_i32 : i32, i32
  }
  func.func @transform_3(%arg0: i32, %arg1: i32) -> (i32, i32) {
    %c0_i32 = arith.constant 0 : i32
    %c0_i32_0 = arith.constant 0 : i32
    return %arg0, %c0_i32 : i32, i32
  }
  func.func @transform_4(%arg0: i32, %arg1: i32) -> (i32, i32, i32) {
    %c0_i32 = arith.constant 0 : i32
    %c0_i32_0 = arith.constant 0 : i32
    %c0_i32_1 = arith.constant 0 : i32
    %c0_i32_2 = arith.constant 0 : i32
    return %c0_i32, %c0_i32_0, %c0_i32_1 : i32, i32, i32
  }
  func.func @transform_5(%arg0: i32, %arg1: i32) -> (i32, i32, i32) {
    %c0_i32 = arith.constant 0 : i32
    %c0_i32_0 = arith.constant 0 : i32
    %c0_i32_1 = arith.constant 0 : i32
    %c0_i32_2 = arith.constant 0 : i32
    return %c0_i32, %c0_i32_0, %c0_i32_1 : i32, i32, i32
  }
  func.func @transform_6(%arg0: i32, %arg1: i32) -> (i32, i32, i32) {
    %c0_i32 = arith.constant 0 : i32
    %c0_i32_0 = arith.constant 0 : i32
    %c0_i32_1 = arith.constant 0 : i32
    %c0_i32_2 = arith.constant 0 : i32
    return %c0_i32, %c0_i32_0, %c0_i32_1 : i32, i32, i32
  }
  func.func @transform_7(%arg0: i32, %arg1: i32) -> (i32, i32, i32) {
    %c0_i32 = arith.constant 0 : i32
    %c0_i32_0 = arith.constant 0 : i32
    %c0_i32_1 = arith.constant 0 : i32
    %c0_i32_2 = arith.constant 0 : i32
    return %c0_i32, %c0_i32_0, %c0_i32_1 : i32, i32, i32
  }
  func.func @transform_8(%arg0: i32, %arg1: i32) -> (i32, i32, i32) {
    %c0_i32 = arith.constant 0 : i32
    %c0_i32_0 = arith.constant 0 : i32
    %c0_i32_1 = arith.constant 0 : i32
    %c0_i32_2 = arith.constant 0 : i32
    return %c0_i32, %c0_i32_0, %c0_i32_1 : i32, i32, i32
  }
  func.func @transform_9(%arg0: i32, %arg1: i32) -> (i32, i32, i32) {
    %c0_i32 = arith.constant 0 : i32
    %c0_i32_0 = arith.constant 0 : i32
    %c0_i32_1 = arith.constant 0 : i32
    %c0_i32_2 = arith.constant 0 : i32
    return %c0_i32, %c0_i32_0, %c0_i32_1 : i32, i32, i32
  }
  func.func @transform_10(%arg0: i32, %arg1: i32) -> (i32, i32) {
    %c0_i32 = arith.constant 0 : i32
    %c0_i32_0 = arith.constant 0 : i32
    %c0_i32_1 = arith.constant 0 : i32
    return %c0_i32, %c0_i32_0 : i32, i32
  }
  func.func @transform_11(%arg0: i32, %arg1: i32) -> (i32, i32) {
    %c0_i32 = arith.constant 0 : i32
    %c0_i32_0 = arith.constant 0 : i32
    %c0_i32_1 = arith.constant 0 : i32
    return %c0_i32, %c0_i32_0 : i32, i32
  }
  func.func @transform_12(%arg0: i32, %arg1: i32) -> (i32, i32) {
    %c0_i32 = arith.constant 0 : i32
    %c0_i32_0 = arith.constant 0 : i32
    return %arg0, %c0_i32 : i32, i32
  }
  func.func @transform_13(%arg0: i32, %arg1: i32) -> (i32, i32, i32) {
    %c0_i32 = arith.constant 0 : i32
    %c0_i32_0 = arith.constant 0 : i32
    return %arg1, %arg0, %c0_i32 : i32, i32, i32
  }
  func.func @transform_14(%arg0: i32, %arg1: i32) -> (i32, i32, i32) {
    %c0_i32 = arith.constant 0 : i32
    %c0_i32_0 = arith.constant 0 : i32
    return %arg1, %arg0, %c0_i32 : i32, i32, i32
  }
}

</mosaic_0001>

<llo_original>
// kernel: tpu_custom_call.1
$region0: #{tpu_custom_call.1}
  #allocation0 [shape = 'u32[]', space=smem, size = 0x4, offset = 0x4, fixed_abs, tag = 'smem constant byte address 0x4 - core index']
  #allocation1 [shape = 'u32[72,128]{1,0:T(1,128)}', space=vmem, size = 0x9000, scoped, tag = 'internal scratch']
  #allocation2 [shape = 'f32[64,32]{1,0:T(8,128)}', space=vmem, size = 0x8000, scoped, tag = 'scratch operand']
  %s0 = inlined_call_operand.vmem [shape: f32[128,16], index: 0, kind: input, shape index: {}]
  %s1 = inlined_call_operand.vmem [shape: f32[16,128], index: 1, kind: input, shape index: {}]
  %s2 = inlined_call_operand.vmem [shape: f32[128,128], index: 2, kind: input, shape index: {}]
  %s3 = inlined_call_operand.hbm [shape: f32[128,128], index: 3, kind: input, shape index: {}]
  %s4 = inlined_call_operand.vmem [shape: f32[4,16,1], index: 4, kind: input, shape index: {}]
  %s5 = inlined_call_operand.vmem [shape: f32[4,1,16], index: 5, kind: input, shape index: {}]
  %s6 = inlined_call_operand.vmem [shape: f32[4,1,1], index: 6, kind: input, shape index: {}]
  %s7 = inlined_call_operand.vmem [shape: f32[4,1,1], index: 7, kind: input, shape index: {}]
  %s8 = inlined_call_operand.hbm [shape: f32[8,16,32], index: 8, kind: input, shape index: {}]
  %s9 = inlined_call_operand.vmem [shape: f32[8,1,32], index: 9, kind: input, shape index: {}]
  %s10 = inlined_call_operand.vmem [shape: f32[16,32], index: 10, kind: input, shape index: {}]
  %s11 = inlined_call_operand.vmem [shape: f32[1,32], index: 11, kind: input, shape index: {}]
  %s12 = inlined_call_operand.vmem [shape: f32[128,32], index: 12, kind: output, shape index: {0}]
  %s13 = inlined_call_operand.hbm [shape: f32[4,128,128], index: 13, kind: output, shape index: {1}]
  %s14 = inlined_call_operand.hbm [shape: f32[4,128,128], index: 14, kind: output, shape index: {2}]
  %15 = xla_tuple %s12, %s13, %s14
  %s16 = sld [smem:[#allocation0]]
  $region113: #{tpu_custom_call.1} parent=0
    _
  %s18 = ssub.s32 1, %s16
  %s19 = scalar_select 0, %s18, %s16
  $region1: #{tpu_custom_call.1} parent=0
    #allocation3 [shape = 'u8[65536]{0}', space=vmem, size = 0x10000, scoped, tag = 'input window, operand 3']
    #allocation4 [shape = 's32[2]{0}', space=sflag, size = 0x8, scoped, tag = 'scoped memory for tpu_custom_call.1']
    #allocation5 [shape = 's32[2]{0}', space=sflag, size = 0x8, scoped, tag = 'scoped memory for tpu_custom_call.1']
    #allocation6 [shape = 'u8[65536]{0}', space=vmem, size = 0x10000, scoped, tag = 'input window, operand 8, single buffered']
    #allocation7 [shape = 's32[1]{0}', space=sflag, size = 0x4, scoped, tag = 'scoped memory for tpu_custom_call.1']
    #allocation8 [shape = 'u8[65536]{0}', space=vmem, size = 0x10000, scoped, tag = 'output window, operand 1']
    #allocation9 [shape = 'u8[65536]{0}', space=vmem, size = 0x10000, scoped, tag = 'output window, operand 2']
    #allocation10 [shape = 's32[2]{0}', space=sflag, size = 0x8, scoped, tag = 'scoped memory for tpu_custom_call.1']
    %20 = vsyncpa [#allocation4], 0
    %s21 = scalar_lea.sflag [#allocation4], 1
    %22 = vsyncpa %s21, 0
    %23 = vsyncpa [#allocation7], 0
    %24 = vsyncpa [#allocation5], 0
    %s25 = scalar_lea.sflag [#allocation5], 1
    %26 = vsyncpa %s25, 0
    %27 = vsyncpa [#allocation10], 0
    %s28 = scalar_lea.sflag [#allocation10], 1
    %29 = vsyncpa %s28, 0
    loop: start=0, step=1, limit=10
    $region2: #{tpu_custom_call.1} parent=1 // loop_pre_header
      _
    $region3: #{tpu_custom_call.1} parent=1 // loop_header
      %s31 = sphi 0, %s35
      %p32 = scmp.ge.s32.totalorder %s31, 10
      %s38 = sphi 0, %s50
      %s39 = sphi 0, %s46
      %s40 = sphi 0, %s38
      %s41 = sphi 0, %s39
      %s42 = sphi 0, %s40
      %s43 = sphi 0, %s41
      %s51 = sphi 0, %s51
      %s53 = sphi 0, %s51
      %s54 = sphi 0, %s53
      %s68 = sphi 0, %s54
      %s72 = sphi 0, %s72
      %s74 = sphi 0, %s72
      %s75 = sphi 0, %s74
      %s89 = sphi 0, %s75
      %s95 = sphi 0, %s97
      %s98 = sphi 0, %s95
      %s99 = sphi 0, %s98
      %s115 = sphi 0, %s99
      %s121 = sphi 0, %s123
      %s124 = sphi 0, %s121
      %s125 = sphi 0, %s124
      %s141 = sphi 0, %s125
      %s145 = sphi 0, %s145
      %s147 = sphi 0, %s145
      %s148 = sphi 0, %s147
      %s162 = sphi 0, %s148
      %s166 = sphi 0, %s166
      %s168 = sphi 0, %s166
      %s169 = sphi 0, %s168
      %s183 = sphi 0, %s169
      %s187 = sphi 0, %s187
      %s189 = sphi 0, %s187
      %s190 = sphi 0, %s189
      %s204 = sphi 0, %s190
      %s208 = sphi 0, %s208
      %s210 = sphi 0, %s208
      %s211 = sphi 0, %s210
      %s225 = sphi 0, %s211
      %s229 = sphi 0, %s229
      %s231 = sphi 0, %s229
      %s232 = sphi 0, %s231
      %s246 = sphi 0, %s232
      %s250 = sphi 0, %s250
      %s252 = sphi 0, %s250
      %s253 = sphi 0, %s252
      %s267 = sphi 0, %s253
      %s271 = sphi 0, %s271
      %s273 = sphi 0, %s271
      %s274 = sphi 0, %s273
      %s288 = sphi 0, %s274
      %s292 = sphi 0, %s292
      %s294 = sphi 0, %s292
      %s295 = sphi 0, %s294
      %s309 = sphi 0, %s295
      %s315 = sphi 0, %s317
      %s318 = sphi 0, %s315
      %s319 = sphi 0, %s318
      %s335 = sphi 0, %s319
      %s343 = sphi 0, %s345
      %s346 = sphi 0, %s343
      %s347 = sphi 0, %s346
      %s363 = sphi 0, %s347
      %s371 = sphi 0, %s373
      %s374 = sphi 0, %s371
      %s375 = sphi 0, %s374
      %s391 = sphi 0, %s375
    $region4: #{tpu_custom_call.1} parent=1 // loop_header_branch
      %34 = sbr.rel (%p32) target = $region8
    $region5: #{tpu_custom_call.1} parent=1 // loop_body
      %s36 = ssub.s32 %s31, 1
      %s37 = ssub.s32 %s31, 2
      %s44 = sadd.s32 1, %s39
      %p45 = scmp.ge.s32.totalorder %s44, 4
      %s46 = scalar_select %p45, 0, %s44
      %s47 = sadd.s32 1, %s38
      %s48 = scalar_select %p45, %s47, %s38
      %p49 = scmp.ge.s32.totalorder %s48, 2
      %s50 = scalar_select %p49, 0, %s48
      %s52 = sadd.s32 %s51, 1
      %p55 = scmp.eq.s32.totalorder %s31, 7
      %p56 = scmp.ne.s32.totalorder %s51, %s53
      %p57 = scmp.eq.s32.totalorder %s31, 0
      %p58 = por %p56, %p57
      %p59 = scmp.ne.s32.totalorder %s51, %s53
      %p60 = scmp.eq.s32.totalorder %s36, 7
      %p61 = por %p59, %p60
      %p62 = scmp.ne.s32.totalorder %s53, %s54
      %p63 = scmp.eq.s32.totalorder %s36, 0
      %p64 = por %p62, %p63
      %p65 = scmp.ne.s32.totalorder %s53, %s54
      %p66 = scmp.eq.s32.totalorder %s37, 7
      %p67 = por %p65, %p66
      %p69 = scmp.ne.s32.totalorder %s54, %s68
      %p70 = scmp.eq.s32.totalorder %s37, 0
      %p71 = por %p69, %p70
      %s73 = sadd.s32 %s72, 1
      %p76 = scmp.eq.s32.totalorder %s31, 7
      %p77 = scmp.ne.s32.totalorder %s72, %s74
      %p78 = scmp.eq.s32.totalorder %s31, 0
      %p79 = por %p77, %p78
      %p80 = scmp.ne.s32.totalorder %s72, %s74
      %p81 = scmp.eq.s32.totalorder %s36, 7
      %p82 = por %p80, %p81
      %p83 = scmp.ne.s32.totalorder %s74, %s75
      %p84 = scmp.eq.s32.totalorder %s36, 0
      %p85 = por %p83, %p84
      %p86 = scmp.ne.s32.totalorder %s74, %s75
      %p87 = scmp.eq.s32.totalorder %s37, 7
      %p88 = por %p86, %p87
      %p90 = scmp.ne.s32.totalorder %s75, %s89
      %p91 = scmp.eq.s32.totalorder %s37, 0
      %p92 = por %p90, %p91
      %s93 = ssub.s32 %s38, %s50
      %p94 = scmp.eq.s32.totalorder %s93, 0
      %s96 = sadd.s32 %s95, 1
      %s97 = scalar_select %p94, %s95, %s96
      %p100 = pneg %p94
      %p101 = scmp.eq.s32.totalorder %s31, 7
      %p102 = por %p100, %p101
      %p103 = scmp.ne.s32.totalorder %s95, %s98
      %p104 = scmp.eq.s32.totalorder %s31, 0
      %p105 = por %p103, %p104
      %p106 = scmp.ne.s32.totalorder %s95, %s98
      %p107 = scmp.eq.s32.totalorder %s36, 7
      %p108 = por %p106, %p107
      %p109 = scmp.ne.s32.totalorder %s98, %s99
      %p110 = scmp.eq.s32.totalorder %s36, 0
      %p111 = por %p109, %p110
      %p112 = scmp.ne.s32.totalorder %s98, %s99
      %p113 = scmp.eq.s32.totalorder %s37, 7
      %p114 = por %p112, %p113
      %p116 = scmp.ne.s32.totalorder %s99, %s115
      %p117 = scmp.eq.s32.totalorder %s37, 0
      %p118 = por %p116, %p117
      %s119 = ssub.s32 %s38, %s50
      %p120 = scmp.eq.s32.totalorder %s119, 0
      %s122 = sadd.s32 %s121, 1
      %s123 = scalar_select %p120, %s121, %s122
      %p126 = pneg %p120
      %p127 = scmp.eq.s32.totalorder %s31, 7
      %p128 = por %p126, %p127
      %p129 = scmp.ne.s32.totalorder %s121, %s124
      %p130 = scmp.eq.s32.totalorder %s31, 0
      %p131 = por %p129, %p130
      %p132 = scmp.ne.s32.totalorder %s121, %s124
      %p133 = scmp.eq.s32.totalorder %s36, 7
      %p134 = por %p132, %p133
      %p135 = scmp.ne.s32.totalorder %s124, %s125
      %p136 = scmp.eq.s32.totalorder %s36, 0
      %p137 = por %p135, %p136
      %p138 = scmp.ne.s32.totalorder %s124, %s125
      %p139 = scmp.eq.s32.totalorder %s37, 7
      %p140 = por %p138, %p139
      %p142 = scmp.ne.s32.totalorder %s125, %s141
      %p143 = scmp.eq.s32.totalorder %s37, 0
      %p144 = por %p142, %p143
      %s146 = sadd.s32 %s145, 1
      %p149 = scmp.eq.s32.totalorder %s31, 7
      %p150 = scmp.ne.s32.totalorder %s145, %s147
      %p151 = scmp.eq.s32.totalorder %s31, 0
      %p152 = por %p150, %p151
      %p153 = scmp.ne.s32.totalorder %s145, %s147
      %p154 = scmp.eq.s32.totalorder %s36, 7
      %p155 = por %p153, %p154
      %p156 = scmp.ne.s32.totalorder %s147, %s148
      %p157 = scmp.eq.s32.totalorder %s36, 0
      %p158 = por %p156, %p157
      %p159 = scmp.ne.s32.totalorder %s147, %s148
      %p160 = scmp.eq.s32.totalorder %s37, 7
      %p161 = por %p159, %p160
      %p163 = scmp.ne.s32.totalorder %s148, %s162
      %p164 = scmp.eq.s32.totalorder %s37, 0
      %p165 = por %p163, %p164
      %s167 = sadd.s32 %s166, 1
      %p170 = scmp.eq.s32.totalorder %s31, 7
      %p171 = scmp.ne.s32.totalorder %s166, %s168
      %p172 = scmp.eq.s32.totalorder %s31, 0
      %p173 = por %p171, %p172
      %p174 = scmp.ne.s32.totalorder %s166, %s168
      %p175 = scmp.eq.s32.totalorder %s36, 7
      %p176 = por %p174, %p175
      %p177 = scmp.ne.s32.totalorder %s168, %s169
      %p178 = scmp.eq.s32.totalorder %s36, 0
      %p179 = por %p177, %p178
      %p180 = scmp.ne.s32.totalorder %s168, %s169
      %p181 = scmp.eq.s32.totalorder %s37, 7
      %p182 = por %p180, %p181
      %p184 = scmp.ne.s32.totalorder %s169, %s183
      %p185 = scmp.eq.s32.totalorder %s37, 0
      %p186 = por %p184, %p185
      %s188 = sadd.s32 %s187, 1
      %p191 = scmp.eq.s32.totalorder %s31, 7
      %p192 = scmp.ne.s32.totalorder %s187, %s189
      %p193 = scmp.eq.s32.totalorder %s31, 0
      %p194 = por %p192, %p193
      %p195 = scmp.ne.s32.totalorder %s187, %s189
      %p196 = scmp.eq.s32.totalorder %s36, 7
      %p197 = por %p195, %p196
      %p198 = scmp.ne.s32.totalorder %s189, %s190
      %p199 = scmp.eq.s32.totalorder %s36, 0
      %p200 = por %p198, %p199
      %p201 = scmp.ne.s32.totalorder %s189, %s190
      %p202 = scmp.eq.s32.totalorder %s37, 7
      %p203 = por %p201, %p202
      %p205 = scmp.ne.s32.totalorder %s190, %s204
      %p206 = scmp.eq.s32.totalorder %s37, 0
      %p207 = por %p205, %p206
      %s209 = sadd.s32 %s208, 1
      %p212 = scmp.eq.s32.totalorder %s31, 7
      %p213 = scmp.ne.s32.totalorder %s208, %s210
      %p214 = scmp.eq.s32.totalorder %s31, 0
      %p215 = por %p213, %p214
      %p216 = scmp.ne.s32.totalorder %s208, %s210
      %p217 = scmp.eq.s32.totalorder %s36, 7
      %p218 = por %p216, %p217
      %p219 = scmp.ne.s32.totalorder %s210, %s211
      %p220 = scmp.eq.s32.totalorder %s36, 0
      %p221 = por %p219, %p220
      %p222 = scmp.ne.s32.totalorder %s210, %s211
      %p223 = scmp.eq.s32.totalorder %s37, 7
      %p224 = por %p222, %p223
      %p226 = scmp.ne.s32.totalorder %s211, %s225
      %p227 = scmp.eq.s32.totalorder %s37, 0
      %p228 = por %p226, %p227
      %s230 = sadd.s32 %s229, 1
      %p233 = scmp.eq.s32.totalorder %s31, 7
      %p234 = scmp.ne.s32.totalorder %s229, %s231
      %p235 = scmp.eq.s32.totalorder %s31, 0
      %p236 = por %p234, %p235
      %p237 = scmp.ne.s32.totalorder %s229, %s231
      %p238 = scmp.eq.s32.totalorder %s36, 7
      %p239 = por %p237, %p238
      %p240 = scmp.ne.s32.totalorder %s231, %s232
      %p241 = scmp.eq.s32.totalorder %s36, 0
      %p242 = por %p240, %p241
      %p243 = scmp.ne.s32.totalorder %s231, %s232
      %p244 = scmp.eq.s32.totalorder %s37, 7
      %p245 = por %p243, %p244
      %p247 = scmp.ne.s32.totalorder %s232, %s246
      %p248 = scmp.eq.s32.totalorder %s37, 0
      %p249 = por %p247, %p248
      %s251 = sadd.s32 %s250, 1
      %p254 = scmp.eq.s32.totalorder %s31, 7
      %p255 = scmp.ne.s32.totalorder %s250, %s252
      %p256 = scmp.eq.s32.totalorder %s31, 0
      %p257 = por %p255, %p256
      %p258 = scmp.ne.s32.totalorder %s250, %s252
      %p259 = scmp.eq.s32.totalorder %s36, 7
      %p260 = por %p258, %p259
      %p261 = scmp.ne.s32.totalorder %s252, %s253
      %p262 = scmp.eq.s32.totalorder %s36, 0
      %p263 = por %p261, %p262
      %p264 = scmp.ne.s32.totalorder %s252, %s253
      %p265 = scmp.eq.s32.totalorder %s37, 7
      %p266 = por %p264, %p265
      %p268 = scmp.ne.s32.totalorder %s253, %s267
      %p269 = scmp.eq.s32.totalorder %s37, 0
      %p270 = por %p268, %p269
      %s272 = sadd.s32 %s271, 1
      %p275 = scmp.eq.s32.totalorder %s31, 7
      %p276 = scmp.ne.s32.totalorder %s271, %s273
      %p277 = scmp.eq.s32.totalorder %s31, 0
      %p278 = por %p276, %p277
      %p279 = scmp.ne.s32.totalorder %s271, %s273
      %p280 = scmp.eq.s32.totalorder %s36, 7
      %p281 = por %p279, %p280
      %p282 = scmp.ne.s32.totalorder %s273, %s274
      %p283 = scmp.eq.s32.totalorder %s36, 0
      %p284 = por %p282, %p283
      %p285 = scmp.ne.s32.totalorder %s273, %s274
      %p286 = scmp.eq.s32.totalorder %s37, 7
      %p287 = por %p285, %p286
      %p289 = scmp.ne.s32.totalorder %s274, %s288
      %p290 = scmp.eq.s32.totalorder %s37, 0
      %p291 = por %p289, %p290
      %s293 = sadd.s32 %s292, 1
      %p296 = scmp.eq.s32.totalorder %s31, 7
      %p297 = scmp.ne.s32.totalorder %s292, %s294
      %p298 = scmp.eq.s32.totalorder %s31, 0
      %p299 = por %p297, %p298
      %p300 = scmp.ne.s32.totalorder %s292, %s294
      %p301 = scmp.eq.s32.totalorder %s36, 7
      %p302 = por %p300, %p301
      %p303 = scmp.ne.s32.totalorder %s294, %s295
      %p304 = scmp.eq.s32.totalorder %s36, 0
      %p305 = por %p303, %p304
      %p306 = scmp.ne.s32.totalorder %s294, %s295
      %p307 = scmp.eq.s32.totalorder %s37, 7
      %p308 = por %p306, %p307
      %p310 = scmp.ne.s32.totalorder %s295, %s309
      %p311 = scmp.eq.s32.totalorder %s37, 0
      %p312 = por %p310, %p311
      %s313 = ssub.s32 %s38, %s50
      %p314 = scmp.eq.s32.totalorder %s313, 0
      %s316 = sadd.s32 %s315, 1
      %s317 = scalar_select %p314, %s315, %s316
      %p320 = pneg %p314
      %p321 = scmp.eq.s32.totalorder %s31, 7
      %p322 = por %p320, %p321
      %p323 = scmp.ne.s32.totalorder %s315, %s318
      %p324 = scmp.eq.s32.totalorder %s31, 0
      %p325 = por %p323, %p324
      %p326 = scmp.ne.s32.totalorder %s315, %s318
      %p327 = scmp.eq.s32.totalorder %s36, 7
      %p328 = por %p326, %p327
      %p329 = scmp.ne.s32.totalorder %s318, %s319
      %p330 = scmp.eq.s32.totalorder %s36, 0
      %p331 = por %p329, %p330
      %p332 = scmp.ne.s32.totalorder %s318, %s319
      %p333 = scmp.eq.s32.totalorder %s37, 7
      %p334 = por %p332, %p333
      %p336 = scmp.ne.s32.totalorder %s319, %s335
      %p337 = scmp.eq.s32.totalorder %s37, 0
      %p338 = por %p336, %p337
      %s339 = ssub.s32 %s39, %s46
      %s340 = ssub.s32 %s38, %s50
      %s341 = sor.u32 %s339, %s340
      %p342 = scmp.eq.s32.totalorder %s341, 0
      %s344 = sadd.s32 %s343, 1
      %s345 = scalar_select %p342, %s343, %s344
      %p348 = pneg %p342
      %p349 = scmp.eq.s32.totalorder %s31, 7
      %p350 = por %p348, %p349
      %p351 = scmp.ne.s32.totalorder %s343, %s346
      %p352 = scmp.eq.s32.totalorder %s31, 0
      %p353 = por %p351, %p352
      %p354 = scmp.ne.s32.totalorder %s343, %s346
      %p355 = scmp.eq.s32.totalorder %s36, 7
      %p356 = por %p354, %p355
      %p357 = scmp.ne.s32.totalorder %s346, %s347
      %p358 = scmp.eq.s32.totalorder %s36, 0
      %p359 = por %p357, %p358
      %p360 = scmp.ne.s32.totalorder %s346, %s347
      %p361 = scmp.eq.s32.totalorder %s37, 7
      %p362 = por %p360, %p361
      %p364 = scmp.ne.s32.totalorder %s347, %s363
      %p365 = scmp.eq.s32.totalorder %s37, 0
      %p366 = por %p364, %p365
      %s367 = ssub.s32 %s39, %s46
      %s368 = ssub.s32 %s38, %s50
      %s369 = sor.u32 %s367, %s368
      %p370 = scmp.eq.s32.totalorder %s369, 0
      %s372 = sadd.s32 %s371, 1
      %s373 = scalar_select %p370, %s371, %s372
      %p376 = pneg %p370
      %p377 = scmp.eq.s32.totalorder %s31, 7
      %p378 = por %p376, %p377
      %p379 = scmp.ne.s32.totalorder %s371, %s374
      %p380 = scmp.eq.s32.totalorder %s31, 0
      %p381 = por %p379, %p380
      %p382 = scmp.ne.s32.totalorder %s371, %s374
      %p383 = scmp.eq.s32.totalorder %s36, 7
      %p384 = por %p382, %p383
      %p385 = scmp.ne.s32.totalorder %s374, %s375
      %p386 = scmp.eq.s32.totalorder %s36, 0
      %p387 = por %p385, %p386
      %p388 = scmp.ne.s32.totalorder %s374, %s375
      %p389 = scmp.eq.s32.totalorder %s37, 7
      %p390 = por %p388, %p389
      %p392 = scmp.ne.s32.totalorder %s375, %s391
      %p393 = scmp.eq.s32.totalorder %s37, 0
      %p394 = por %p392, %p393
      %p395 = scmp.le.s32.totalorder 1, %s31
      %p396 = scmp.lt.s32.totalorder %s31, 9
      %p397 = pnand %p395, %p396
      %p398 = pneg %p397
      // Predicated region
      $region9: #{tpu_custom_call.1} parent=5 // pred_check
        _
      $region10: #{tpu_custom_call.1} parent=5 // pred_check_branch
        %400 = sbr.rel (%p397) target = $region12
      $region11: #{tpu_custom_call.1} parent=5 // pred_region
        %s401 = ssub.s32 %s31, 1
        // Predicated region
        $region13: #{tpu_custom_call.1} parent=11 // pred_check
          %p402 = pneg %p64
        $region14: #{tpu_custom_call.1} parent=11 // pred_check_branch
          %404 = sbr.rel (%p402) target = $region16
        $region15: #{tpu_custom_call.1} parent=11 // pred_region
          _
        $region16: #{tpu_custom_call.1} parent=11 // pred_fallthru
          _
        // Predicated region
        $region17: #{tpu_custom_call.1} parent=11 // pred_check
          %p405 = pneg %p85
        $region18: #{tpu_custom_call.1} parent=11 // pred_check_branch
          %407 = sbr.rel (%p405) target = $region20
        $region19: #{tpu_custom_call.1} parent=11 // pred_region
          _
        $region20: #{tpu_custom_call.1} parent=11 // pred_fallthru
          _
        // Predicated region
        $region21: #{tpu_custom_call.1} parent=11 // pred_check
          %p408 = pneg %p158
        $region22: #{tpu_custom_call.1} parent=11 // pred_check_branch
          %410 = sbr.rel (%p408) target = $region24
        $region23: #{tpu_custom_call.1} parent=11 // pred_region
          _
        $region24: #{tpu_custom_call.1} parent=11 // pred_fallthru
          _
        // Predicated region
        $region25: #{tpu_custom_call.1} parent=11 // pred_check
          %p411 = pneg %p179
        $region26: #{tpu_custom_call.1} parent=11 // pred_check_branch
          %413 = sbr.rel (%p411) target = $region28
        $region27: #{tpu_custom_call.1} parent=11 // pred_region
          _
        $region28: #{tpu_custom_call.1} parent=11 // pred_fallthru
          _
        // Predicated region
        $region29: #{tpu_custom_call.1} parent=11 // pred_check
          %p414 = pneg %p200
        $region30: #{tpu_custom_call.1} parent=11 // pred_check_branch
          %416 = sbr.rel (%p414) target = $region32
        $region31: #{tpu_custom_call.1} parent=11 // pred_region
          _
        $region32: #{tpu_custom_call.1} parent=11 // pred_fallthru
          _
        // Predicated region
        $region33: #{tpu_custom_call.1} parent=11 // pred_check
          %p417 = pneg %p221
        $region34: #{tpu_custom_call.1} parent=11 // pred_check_branch
          %419 = sbr.rel (%p417) target = $region36
        $region35: #{tpu_custom_call.1} parent=11 // pred_region
          _
        $region36: #{tpu_custom_call.1} parent=11 // pred_fallthru
          _
        // Predicated region
        $region37: #{tpu_custom_call.1} parent=11 // pred_check
          %p420 = pneg %p242
        $region38: #{tpu_custom_call.1} parent=11 // pred_check_branch
          %422 = sbr.rel (%p420) target = $region40
        $region39: #{tpu_custom_call.1} parent=11 // pred_region
          %424 = vsyncadd [#allocation7], 0
          %s425 = sshll.u32 %s8, 4
          %s426 = int_to_ptr.hbm [resolvable:$true] %s425
          %s427 = sshll.u32 [#allocation6], 4
          %s428 = int_to_ptr.vmem [resolvable:$true] %s427
          %433 = dma.hbm_to_vmem [thread:$0]  %s426, 2048, %s428, [#allocation7], 128, 128, 8
        $region40: #{tpu_custom_call.1} parent=11 // pred_fallthru
          _
        // Predicated region
        $region41: #{tpu_custom_call.1} parent=11 // pred_check
          %p434 = pneg %p263
        $region42: #{tpu_custom_call.1} parent=11 // pred_check_branch
          %436 = sbr.rel (%p434) target = $region44
        $region43: #{tpu_custom_call.1} parent=11 // pred_region
          _
        $region44: #{tpu_custom_call.1} parent=11 // pred_fallthru
          _
        // Predicated region
        $region45: #{tpu_custom_call.1} parent=11 // pred_check
          %p437 = pneg %p284
        $region46: #{tpu_custom_call.1} parent=11 // pred_check_branch
          %439 = sbr.rel (%p437) target = $region48
        $region47: #{tpu_custom_call.1} parent=11 // pred_region
          _
        $region48: #{tpu_custom_call.1} parent=11 // pred_fallthru
          _
        // Predicated region
        $region49: #{tpu_custom_call.1} parent=11 // pred_check
          %p440 = pneg %p305
        $region50: #{tpu_custom_call.1} parent=11 // pred_check_branch
          %442 = sbr.rel (%p440) target = $region52
        $region51: #{tpu_custom_call.1} parent=11 // pred_region
          _
        $region52: #{tpu_custom_call.1} parent=11 // pred_fallthru
          _
      $region12: #{tpu_custom_call.1} parent=5 // pred_fallthru
        _
      %p443 = scmp.lt.s32.totalorder %s31, 8
      // Predicated region
      $region53: #{tpu_custom_call.1} parent=5 // pred_check
        %p444 = pneg %p443
      $region54: #{tpu_custom_call.1} parent=5 // pred_check_branch
        %446 = sbr.rel (%p444) target = $region56
      $region55: #{tpu_custom_call.1} parent=5 // pred_region
        // Predicated region
        $region57: #{tpu_custom_call.1} parent=55 // pred_check
          %p447 = pneg %p105
        $region58: #{tpu_custom_call.1} parent=55 // pred_check_branch
          %449 = sbr.rel (%p447) target = $region60
        $region59: #{tpu_custom_call.1} parent=55 // pred_region
          %s450 = smul.u32 8, %s38
          %p451 = scmp.lt.s32.totalorder %s450, 15
          %s452 = scalar_select %p451, %s450, 15
          %s453 = smul.addr %s452, 8
          %s454 = scalar_lea.vmem %s2, %s453
          %s455 = smul.u32 8, %s38
        $region60: #{tpu_custom_call.1} parent=55 // pred_fallthru
          _
        // Predicated region
        $region61: #{tpu_custom_call.1} parent=55 // pred_check
          %p456 = pneg %p131
        $region62: #{tpu_custom_call.1} parent=55 // pred_check_branch
          %458 = sbr.rel (%p456) target = $region64
        $region63: #{tpu_custom_call.1} parent=55 // pred_region
          %s459 = sand.u32 %s121, 1
          %s460 = scalar_lea.sflag [#allocation4], %s459
          %s461 = sand.u32 %s121, 1
          %s462 = smul.addr %s461, 64
          %s463 = scalar_lea.vmem [#allocation3], %s462
          %s464 = smul.u32 8, %s38
          %466 = vsyncadd %s460, 0
          %s467 = smul.addr %s464, 8
          %s468 = scalar_lea.hbm %s3, %s467
          %s469 = sshll.u32 %s468, 4
          %s470 = int_to_ptr.hbm [resolvable:$true] %s469
          %s471 = sshll.u32 %s463, 4
          %s472 = int_to_ptr.vmem [resolvable:$true] %s471
          %477 = dma.hbm_to_vmem [thread:$0]  %s470, 1024, %s472, %s460, 128, 128, 8
        $region64: #{tpu_custom_call.1} parent=55 // pred_fallthru
          _
      $region56: #{tpu_custom_call.1} parent=5 // pred_fallthru
        _
      %p478 = scmp.le.s32.totalorder 1, %s31
      %p479 = scmp.lt.s32.totalorder %s31, 9
      %p480 = pnand %p478, %p479
      %p481 = pneg %p480
      // Predicated region
      $region65: #{tpu_custom_call.1} parent=5 // pred_check
        _
      $region66: #{tpu_custom_call.1} parent=5 // pred_check_branch
        %483 = sbr.rel (%p480) target = $region68
      $region67: #{tpu_custom_call.1} parent=5 // pred_region
        %s484 = ssub.s32 %s31, 1
        %s485 = sand.u32 %s124, 1
        %s486 = scalar_lea.sflag [#allocation4], %s485
        %s487 = sand.u32 %s124, 1
        %s488 = smul.addr %s487, 64
        %s489 = scalar_lea.vmem [#allocation3], %s488
        // Predicated region
        $region69: #{tpu_custom_call.1} parent=67 // pred_check
          %p490 = pneg %p137
        $region70: #{tpu_custom_call.1} parent=67 // pred_check_branch
          %492 = sbr.rel (%p490) target = $region72
        $region71: #{tpu_custom_call.1} parent=67 // pred_region
          %494 = dma.done %s486, 1024
        $region72: #{tpu_custom_call.1} parent=67 // pred_fallthru
          _
        // Predicated region
        $region73: #{tpu_custom_call.1} parent=67 // pred_check
          %p495 = pneg %p242
        $region74: #{tpu_custom_call.1} parent=67 // pred_check_branch
          %497 = sbr.rel (%p495) target = $region76
        $region75: #{tpu_custom_call.1} parent=67 // pred_region
          %499 = dma.done [#allocation7], 2048
        $region76: #{tpu_custom_call.1} parent=67 // pred_fallthru
          _
        %p500 = pneg %p64
        %p501 = pneg %p61
        %p502 = pneg %p85
        %p503 = pneg %p82
        %s504 = smul.u32 8, %s40
        %p505 = scmp.lt.s32.totalorder %s504, 15
        %s506 = scalar_select %p505, %s504, 15
        %s507 = smul.addr %s506, 8
        %s508 = scalar_lea.vmem %s2, %s507
        %p509 = pneg %p111
        %p510 = pneg %p108
        %s511 = sand.u32 %s124, 1
        %s512 = scalar_lea.sflag [#allocation4], %s511
        %s513 = sand.u32 %s124, 1
        %s514 = smul.addr %s513, 64
        %s515 = scalar_lea.vmem [#allocation3], %s514
        %p516 = pneg %p137
        %p517 = pneg %p134
        %p518 = pneg %p158
        %p519 = pneg %p155
        %p520 = pneg %p179
        %p521 = pneg %p176
        %p522 = pneg %p200
        %p523 = pneg %p197
        %p524 = pneg %p221
        %p525 = pneg %p218
        %p526 = pneg %p242
        %p527 = pneg %p239
        %p528 = pneg %p263
        %p529 = pneg %p260
        %p530 = pneg %p284
        %p531 = pneg %p281
        %p532 = pneg %p305
        %p533 = pneg %p302
        %p534 = pneg %p331
        %p535 = pneg %p328
        %s536 = smul.u32 8, %s40
        %p537 = scmp.lt.s32.totalorder %s536, 15
        %s538 = scalar_select %p537, %s536, 15
        %s539 = smul.addr %s538, 8
        %s540 = scalar_lea.vmem %s12, %s539
        %p541 = pneg %p359
        %p542 = pneg %p356
        %s543 = sand.u32 %s346, 1
        %s544 = scalar_lea.sflag [#allocation5], %s543
        %s545 = sand.u32 %s346, 1
        %s546 = smul.addr %s545, 64
        %s547 = scalar_lea.vmem [#allocation8], %s546
        %p548 = pneg %p387
        %p549 = pneg %p384
        %s550 = sand.u32 %s374, 1
        %s551 = scalar_lea.sflag [#allocation10], %s550
        %s552 = sand.u32 %s374, 1
        %s553 = smul.addr %s552, 64
        %s554 = scalar_lea.vmem [#allocation9], %s553
        %s555 = smul.u32 8, %s40
        %p556 = scmp.lt.s32.totalorder %s555, 15
        %s557 = scalar_select %p556, %s555, 15
        %s558 = smul.addr %s557, 8
        %s559 = scalar_lea.vmem %s2, %s558
        %s560 = smul.u32 8, %s40
        %s561 = smul.u32 8, %s40
        %s562 = smul.u32 8, %s40
        %p563 = scmp.lt.s32.totalorder %s562, 15
        %s564 = scalar_select %p563, %s562, 15
        %s565 = smul.addr %s564, 8
        %s566 = scalar_lea.vmem %s12, %s565
        %s567 = smul.u32 8, %s40
        %s568 = smul.u32 8, %s40
        %s569 = smul.u32 8, %s40
        %s570 = smul.u32 %s40, 64
        %v571 = vld [vmem:[%s0] sm:$0xff]
        %v572 = vld [vmem:[%s0 + $0x8] sm:$0xff]
        %v573 = vld [vmem:[%s0 + $0x10] sm:$0xff]
        %v574 = vld [vmem:[%s0 + $0x18] sm:$0xff]
        %v575 = vld [vmem:[%s0 + $0x20] sm:$0xff]
        %v576 = vld [vmem:[%s0 + $0x28] sm:$0xff]
        %v577 = vld [vmem:[%s0 + $0x30] sm:$0xff]
        %v578 = vld [vmem:[%s0 + $0x38] sm:$0xff]
        %v579 = vld [vmem:[%s0 + $0x40] sm:$0xff]
        %v580 = vld [vmem:[%s0 + $0x48] sm:$0xff]
        %v581 = vld [vmem:[%s0 + $0x50] sm:$0xff]
        %v582 = vld [vmem:[%s0 + $0x58] sm:$0xff]
        %v583 = vld [vmem:[%s0 + $0x60] sm:$0xff]
        %v584 = vld [vmem:[%s0 + $0x68] sm:$0xff]
        %v585 = vld [vmem:[%s0 + $0x70] sm:$0xff]
        %v586 = vld [vmem:[%s0 + $0x78] sm:$0xff]
        %s587 = scalar_lea.vmem %s0, %s570
        %v588 = vld [vmem:[%s587] sm:$0xff]
        %v589 = vld [vmem:[%s587 + $0x8] sm:$0xff]
        %v590 = vld [vmem:[%s587 + $0x10] sm:$0xff]
        %v591 = vld [vmem:[%s587 + $0x18] sm:$0xff]
        %v592 = vld [vmem:[%s587 + $0x20] sm:$0xff]
        %v593 = vld [vmem:[%s587 + $0x28] sm:$0xff]
        %v594 = vld [vmem:[%s587 + $0x30] sm:$0xff]
        %v595 = vld [vmem:[%s587 + $0x38] sm:$0xff]
        %p596 = scmp.eq.s32.totalorder %s41, 0
        // Predicated region
        $region77: #{tpu_custom_call.1} parent=67 // pred_check
          %p597 = pneg %p596
        $region78: #{tpu_custom_call.1} parent=67 // pred_check_branch
          %599 = sbr.rel (%p597) target = $region80
        $region79: #{tpu_custom_call.1} parent=67 // pred_region
          %v600 = vld [vmem:[%s10] sm:$0xff]
          %v601 = vld [vmem:[%s10 + $0x8] sm:$0xff]
          %v602 = vld [vmem:[%s11] sm:$0x1]
          %v604 = vperm.slane %v602, 0
          %vm606 = vcmask 130048
          %v608 = vsel %vm606, %v588, 0
          %v611 = vsel %vm606, %v589, 0
          %v614 = vsel %vm606, %v590, 0
          %v617 = vsel %vm606, %v591, 0
          %v620 = vsel %vm606, %v592, 0
          %v623 = vsel %vm606, %v593, 0
          %v626 = vsel %vm606, %v594, 0
          %v629 = vsel %vm606, %v595, 0
          %631 = vmatpush.msra.mxu0 0.0
          %632 = vmatpush.msra.mxu0 0.0
          %633 = vmatpush.msra.mxu0 0.0
          %634 = vmatpush.msra.mxu0 0.0
          %635 = vmatpush.msra.mxu0 0.0
          %636 = vmatpush.msra.mxu0 0.0
          %637 = vmatpush.msra.mxu0 0.0
          %638 = vmatpush.msra.mxu0 0.0
          %639 = vmatpush.msra.mxu0 0.0
          %640 = vmatpush.msra.mxu0 0.0
          %641 = vmatpush.msra.mxu0 0.0
          %642 = vmatpush.msra.mxu0 0.0
          %643 = vmatpush.msra.mxu0 0.0
          %644 = vmatpush.msra.mxu0 0.0
          %645 = vmatpush.msra.mxu0 %v601
          %646 = vmatpush.msra.mxu0 %v600
          %647 = vmatmul.f32.gmra.mxu0 %v608
          %v648 = vpop.f32.mrf.mxu0
          %v649 = vadd.f32 %v604, %v648
          %650 = vmatmul.f32.gmra.mxu0 %v611
          %v651 = vpop.f32.mrf.mxu0
          %v652 = vadd.f32 %v604, %v651
          %653 = vmatmul.f32.gmra.mxu0 %v614
          %v654 = vpop.f32.mrf.mxu0
          %v655 = vadd.f32 %v604, %v654
          %656 = vmatmul.f32.gmra.mxu0 %v617
          %v657 = vpop.f32.mrf.mxu0
          %v658 = vadd.f32 %v604, %v657
          %659 = vmatmul.f32.gmra.mxu0 %v620
          %v660 = vpop.f32.mrf.mxu0
          %v661 = vadd.f32 %v604, %v660
          %662 = vmatmul.f32.gmra.mxu0 %v623
          %v663 = vpop.f32.mrf.mxu0
          %v664 = vadd.f32 %v604, %v663
          %665 = vmatmul.f32.gmra.mxu0 %v626
          %v666 = vpop.f32.mrf.mxu0
          %v667 = vadd.f32 %v604, %v666
          %668 = vmatmul.f32.gmra.mxu0 %v629
          %v669 = vpop.f32.mrf.mxu0
          %v670 = vadd.f32 %v604, %v669
          %671 = vdwg.mxu0
          %vm672 = vcmask 261120
          %673 = vst.msk [vmem:[#allocation2] sm:$0xff] %vm672, %v649
          %674 = vst.msk [vmem:[#allocation2 + $0x8] sm:$0xff] %vm672, %v652
          %675 = vst.msk [vmem:[#allocation2 + $0x10] sm:$0xff] %vm672, %v655
          %676 = vst.msk [vmem:[#allocation2 + $0x18] sm:$0xff] %vm672, %v658
          %677 = vst.msk [vmem:[#allocation2 + $0x20] sm:$0xff] %vm672, %v661
          %678 = vst.msk [vmem:[#allocation2 + $0x28] sm:$0xff] %vm672, %v664
          %679 = vst.msk [vmem:[#allocation2 + $0x30] sm:$0xff] %vm672, %v667
          %680 = vst.msk [vmem:[#allocation2 + $0x38] sm:$0xff] %vm672, %v670
        $region80: #{tpu_custom_call.1} parent=67 // pred_fallthru
          _
        %v681 = vld [vmem:[%s1] sm:$0xff]
        %v682 = vld [vmem:[%s1 + $0x8] sm:$0xff]
        %s683 = smul.u32 %s41, 16
        %s684 = scalar_lea.vmem %s4, %s683
        %v685 = vld [vmem:[%s684] sm:$0xff]
        %v686 = vld [vmem:[%s684 + $0x8] sm:$0xff]
        %688 = vset.pattern.permute.xlu0 0
        %689 = vperm.xlu0 %688, %v685
        %v690 = vpop.permute.xlu0 %689
        %693 = vset.pattern.permute.xlu0 0
        %694 = vperm.xlu0 %693, %v686
        %v695 = vpop.permute.xlu0 %694
        %v697 = vmul.f32 %v681, %v690
        %v698 = vmul.f32 %v682, %v695
        %v699 = vadd.f32 %v697, %v698
        %v700 = vrot.slane %v699, 4
        %v701 = vadd.f32 %v699, %v700
        %v702 = vrot.slane %v701, 2
        %v703 = vadd.f32 %v701, %v702
        %v704 = vrot.slane %v703, 1
        %v705 = vadd.f32 %v703, %v704
        %s706 = scalar_lea.vmem %s6, %s41
        %v707 = vld [vmem:[%s706] sm:$0x1]
        %709 = vset.pattern.permute.xlu0 0
        %710 = vperm.xlu0 %709, %v707
        %v711 = vpop.permute.xlu0 %710
        %v713 = vperm.slane %v711, 0
        %v714 = vadd.f32 %v705, %v713
        %s715 = scalar_lea.vmem %s5, %s41
        %v716 = vld [vmem:[%s715] sm:$0x1]
        %v718 = vperm.slane %v716, 0
        %v720 = vmul.f32 %v588, %v718
        %v721 = vmul.f32 %v589, %v718
        %v722 = vmul.f32 %v590, %v718
        %v723 = vmul.f32 %v591, %v718
        %v724 = vmul.f32 %v592, %v718
        %v725 = vmul.f32 %v593, %v718
        %v726 = vmul.f32 %v594, %v718
        %v727 = vmul.f32 %v595, %v718
        %vm728 = vcmask 130048
        %v729 = vsel %vm728, %v720, 0.0
        %730 = vadd.xlane.f32.xlu0 %v729
        %v731 = vpop.xlane.xlu0 %730
        %v732 = vsel %vm728, %v721, 0.0
        %733 = vadd.xlane.f32.xlu0 %v732
        %v734 = vpop.xlane.xlu0 %733
        %v735 = vsel %vm728, %v722, 0.0
        %736 = vadd.xlane.f32.xlu0 %v735
        %v737 = vpop.xlane.xlu0 %736
        %v738 = vsel %vm728, %v723, 0.0
        %739 = vadd.xlane.f32.xlu0 %v738
        %v740 = vpop.xlane.xlu0 %739
        %v741 = vsel %vm728, %v724, 0.0
        %742 = vadd.xlane.f32.xlu0 %v741
        %v743 = vpop.xlane.xlu0 %742
        %v744 = vsel %vm728, %v725, 0.0
        %745 = vadd.xlane.f32.xlu0 %v744
        %v746 = vpop.xlane.xlu0 %745
        %v747 = vsel %vm728, %v726, 0.0
        %748 = vadd.xlane.f32.xlu0 %v747
        %v749 = vpop.xlane.xlu0 %748
        %v750 = vsel %vm728, %v727, 0.0
        %751 = vadd.xlane.f32.xlu0 %v750
        %v752 = vpop.xlane.xlu0 %751
        %s753 = scalar_lea.vmem %s7, %s41
        %v754 = vld [vmem:[%s753] sm:$0x1]
        %v756 = vperm.slane %v754, 0
        %v758 = vadd.f32 %v731, %v756
        %v759 = vadd.f32 %v734, %v756
        %v760 = vadd.f32 %v737, %v756
        %v761 = vadd.f32 %v740, %v756
        %v762 = vadd.f32 %v743, %v756
        %v763 = vadd.f32 %v746, %v756
        %v764 = vadd.f32 %v749, %v756
        %v765 = vadd.f32 %v752, %v756
        %767 = vset.pattern.permute.xlu0 0
        %768 = vperm.xlu0 %767, %v758
        %v769 = vpop.permute.xlu0 %768
        %772 = vset.pattern.permute.xlu0 0
        %773 = vperm.xlu0 %772, %v759
        %v774 = vpop.permute.xlu0 %773
        %777 = vset.pattern.permute.xlu0 0
        %778 = vperm.xlu0 %777, %v760
        %v779 = vpop.permute.xlu0 %778
        %782 = vset.pattern.permute.xlu0 0
        %783 = vperm.xlu0 %782, %v761
        %v784 = vpop.permute.xlu0 %783
        %787 = vset.pattern.permute.xlu0 0
        %788 = vperm.xlu0 %787, %v762
        %v789 = vpop.permute.xlu0 %788
        %792 = vset.pattern.permute.xlu0 0
        %793 = vperm.xlu0 %792, %v763
        %v794 = vpop.permute.xlu0 %793
        %797 = vset.pattern.permute.xlu0 0
        %798 = vperm.xlu0 %797, %v764
        %v799 = vpop.permute.xlu0 %798
        %802 = vset.pattern.permute.xlu0 0
        %803 = vperm.xlu0 %802, %v765
        %v804 = vpop.permute.xlu0 %803
        %v806 = vadd.f32 %v769, %v714
        %v807 = vadd.f32 %v774, %v714
        %v808 = vadd.f32 %v779, %v714
        %v809 = vadd.f32 %v784, %v714
        %v810 = vadd.f32 %v789, %v714
        %v811 = vadd.f32 %v794, %v714
        %v812 = vadd.f32 %v799, %v714
        %v813 = vadd.f32 %v804, %v714
        %vm814 = vcmp.ge.f32.partialorder %v806, 0.0
        %vm815 = vcmp.ge.f32.partialorder %v807, 0.0
        %vm816 = vcmp.ge.f32.partialorder %v808, 0.0
        %vm817 = vcmp.ge.f32.partialorder %v809, 0.0
        %vm818 = vcmp.ge.f32.partialorder %v810, 0.0
        %vm819 = vcmp.ge.f32.partialorder %v811, 0.0
        %vm820 = vcmp.ge.f32.partialorder %v812, 0.0
        %vm821 = vcmp.ge.f32.partialorder %v813, 0.0
        %v822 = vmul.f32 %v806, 0.2
        %v823 = vmul.f32 %v807, 0.2
        %v824 = vmul.f32 %v808, 0.2
        %v825 = vmul.f32 %v809, 0.2
        %v826 = vmul.f32 %v810, 0.2
        %v827 = vmul.f32 %v811, 0.2
        %v828 = vmul.f32 %v812, 0.2
        %v829 = vmul.f32 %v813, 0.2
        %v830 = vsel %vm814, %v806, %v822
        %v831 = vsel %vm815, %v807, %v823
        %v832 = vsel %vm816, %v808, %v824
        %v833 = vsel %vm817, %v809, %v825
        %v834 = vsel %vm818, %v810, %v826
        %v835 = vsel %vm819, %v811, %v827
        %v836 = vsel %vm820, %v812, %v828
        %v837 = vsel %vm821, %v813, %v829
        %v838 = vld [vmem:[%s559] sm:$0xff]
        %v839 = vld [vmem:[%s559 + $0x8] sm:$0xff]
        %v840 = vld [vmem:[%s559 + $0x10] sm:$0xff]
        %v841 = vld [vmem:[%s559 + $0x18] sm:$0xff]
        %v842 = vld [vmem:[%s559 + $0x20] sm:$0xff]
        %v843 = vld [vmem:[%s559 + $0x28] sm:$0xff]
        %v844 = vld [vmem:[%s559 + $0x30] sm:$0xff]
        %v845 = vld [vmem:[%s559 + $0x38] sm:$0xff]
        %v846 = vmul.f32 %v830, %v838
        %v847 = vmul.f32 %v831, %v839
        %v848 = vmul.f32 %v832, %v840
        %v849 = vmul.f32 %v833, %v841
        %v850 = vmul.f32 %v834, %v842
        %v851 = vmul.f32 %v835, %v843
        %v852 = vmul.f32 %v836, %v844
        %v853 = vmul.f32 %v837, %v845
        %vm854 = vcmp.ne.f32.partialorder %v846, 0.0
        %vm855 = vcmp.ne.f32.partialorder %v847, 0.0
        %vm856 = vcmp.ne.f32.partialorder %v848, 0.0
        %vm857 = vcmp.ne.f32.partialorder %v849, 0.0
        %vm858 = vcmp.ne.f32.partialorder %v850, 0.0
        %vm859 = vcmp.ne.f32.partialorder %v851, 0.0
        %vm860 = vcmp.ne.f32.partialorder %v852, 0.0
        %vm861 = vcmp.ne.f32.partialorder %v853, 0.0
        %v862 = vsel %vm854, %v846, -1e+30
        %v863 = vsel %vm855, %v847, -1e+30
        %v864 = vsel %vm856, %v848, -1e+30
        %v865 = vsel %vm857, %v849, -1e+30
        %v866 = vsel %vm858, %v850, -1e+30
        %v867 = vsel %vm859, %v851, -1e+30
        %v868 = vsel %vm860, %v852, -1e+30
        %v869 = vsel %vm861, %v853, -1e+30
        %870 = vmax.xlane.f32.xlu0 %v862
        %v871 = vpop.xlane.xlu0 %870
        %872 = vmax.xlane.f32.xlu0 %v863
        %v873 = vpop.xlane.xlu0 %872
        %874 = vmax.xlane.f32.xlu0 %v864
        %v875 = vpop.xlane.xlu0 %874
        %876 = vmax.xlane.f32.xlu0 %v865
        %v877 = vpop.xlane.xlu0 %876
        %878 = vmax.xlane.f32.xlu0 %v866
        %v879 = vpop.xlane.xlu0 %878
        %880 = vmax.xlane.f32.xlu0 %v867
        %v881 = vpop.xlane.xlu0 %880
        %882 = vmax.xlane.f32.xlu0 %v868
        %v883 = vpop.xlane.xlu0 %882
        %884 = vmax.xlane.f32.xlu0 %v869
        %v885 = vpop.xlane.xlu0 %884
        %v886 = vsub.f32 %v846, %v871
        %v887 = vsub.f32 %v847, %v873
        %v888 = vsub.f32 %v848, %v875
        %v889 = vsub.f32 %v849, %v877
        %v890 = vsub.f32 %v850, %v879
        %v891 = vsub.f32 %v851, %v881
        %v892 = vsub.f32 %v852, %v883
        %v893 = vsub.f32 %v853, %v885
        %v894 = vmul.f32 %v886, 1.442695
        %v895 = vpow.pop %v894
        %v896 = vmul.f32 %v887, 1.442695
        %v897 = vpow.pop %v896
        %v898 = vmul.f32 %v888, 1.442695
        %v899 = vpow.pop %v898
        %v900 = vmul.f32 %v889, 1.442695
        %v901 = vpow.pop %v900
        %v902 = vmul.f32 %v890, 1.442695
        %v903 = vpow.pop %v902
        %v904 = vmul.f32 %v891, 1.442695
        %v905 = vpow.pop %v904
        %v906 = vmul.f32 %v892, 1.442695
        %v907 = vpow.pop %v906
        %v908 = vmul.f32 %v893, 1.442695
        %v909 = vpow.pop %v908
        %v910 = vsel %vm854, %v895, 0.0
        %v911 = vsel %vm855, %v897, 0.0
        %v912 = vsel %vm856, %v899, 0.0
        %v913 = vsel %vm857, %v901, 0.0
        %v914 = vsel %vm858, %v903, 0.0
        %v915 = vsel %vm859, %v905, 0.0
        %v916 = vsel %vm860, %v907, 0.0
        %v917 = vsel %vm861, %v909, 0.0
        %918 = vadd.xlane.f32.xlu0 %v910
        %v919 = vpop.xlane.xlu0 %918
        %920 = vadd.xlane.f32.xlu0 %v911
        %v921 = vpop.xlane.xlu0 %920
        %922 = vadd.xlane.f32.xlu0 %v912
        %v923 = vpop.xlane.xlu0 %922
        %924 = vadd.xlane.f32.xlu0 %v913
        %v925 = vpop.xlane.xlu0 %924
        %926 = vadd.xlane.f32.xlu0 %v914
        %v927 = vpop.xlane.xlu0 %926
        %928 = vadd.xlane.f32.xlu0 %v915
        %v929 = vpop.xlane.xlu0 %928
        %930 = vadd.xlane.f32.xlu0 %v916
        %v931 = vpop.xlane.xlu0 %930
        %932 = vadd.xlane.f32.xlu0 %v917
        %v933 = vpop.xlane.xlu0 %932
        %v934 = vmax.f32 %v919, 1e-30
        %v935 = vmax.f32 %v921, 1e-30
        %v936 = vmax.f32 %v923, 1e-30
        %v937 = vmax.f32 %v925, 1e-30
        %v938 = vmax.f32 %v927, 1e-30
        %v939 = vmax.f32 %v929, 1e-30
        %v940 = vmax.f32 %v931, 1e-30
        %v941 = vmax.f32 %v933, 1e-30
        %v942 = vrcp.pop %v934
        %v943 = vrcp.pop %v935
        %v944 = vrcp.pop %v936
        %v945 = vrcp.pop %v937
        %v946 = vrcp.pop %v938
        %v947 = vrcp.pop %v939
        %v948 = vrcp.pop %v940
        %v949 = vrcp.pop %v941
        %vm950 = vcmp.gt.f32.partialorder %v919, 0.0
        %vm951 = vcmp.gt.f32.partialorder %v921, 0.0
        %vm952 = vcmp.gt.f32.partialorder %v923, 0.0
        %vm953 = vcmp.gt.f32.partialorder %v925, 0.0
        %vm954 = vcmp.gt.f32.partialorder %v927, 0.0
        %vm955 = vcmp.gt.f32.partialorder %v929, 0.0
        %vm956 = vcmp.gt.f32.partialorder %v931, 0.0
        %vm957 = vcmp.gt.f32.partialorder %v933, 0.0
        %v958 = vmul.f32 %v910, %v942
        %v959 = vmul.f32 %v911, %v943
        %v960 = vmul.f32 %v912, %v944
        %v961 = vmul.f32 %v913, %v945
        %v962 = vmul.f32 %v914, %v946
        %v963 = vmul.f32 %v915, %v947
        %v964 = vmul.f32 %v916, %v948
        %v965 = vmul.f32 %v917, %v949
        %v966 = vsel %vm950, 1, 0
        %v967 = vsel %vm951, 1, 0
        %v968 = vsel %vm952, 1, 0
        %v969 = vsel %vm953, 1, 0
        %v970 = vsel %vm954, 1, 0
        %v971 = vsel %vm955, 1, 0
        %v972 = vsel %vm956, 1, 0
        %v973 = vsel %vm957, 1, 0
        %vm974 = vcmp.eq.s32.totalorder %v966, 1
        %vm975 = vcmp.eq.s32.totalorder %v967, 1
        %vm976 = vcmp.eq.s32.totalorder %v968, 1
        %vm977 = vcmp.eq.s32.totalorder %v969, 1
        %vm978 = vcmp.eq.s32.totalorder %v970, 1
        %vm979 = vcmp.eq.s32.totalorder %v971, 1
        %vm980 = vcmp.eq.s32.totalorder %v972, 1
        %vm981 = vcmp.eq.s32.totalorder %v973, 1
        %v982 = vsel %vm974, %v958, 0.0
        %v983 = vsel %vm975, %v959, 0.0
        %v984 = vsel %vm976, %v960, 0.0
        %v985 = vsel %vm977, %v961, 0.0
        %v986 = vsel %vm978, %v962, 0.0
        %v987 = vsel %vm979, %v963, 0.0
        %v988 = vsel %vm980, %v964, 0.0
        %v989 = vsel %vm981, %v965, 0.0
        %v990 = vld [vmem:[%s489] sm:$0xff]
        %v991 = vld [vmem:[%s489 + $0x8] sm:$0xff]
        %v992 = vld [vmem:[%s489 + $0x10] sm:$0xff]
        %v993 = vld [vmem:[%s489 + $0x18] sm:$0xff]
        %v994 = vld [vmem:[%s489 + $0x20] sm:$0xff]
        %v995 = vld [vmem:[%s489 + $0x28] sm:$0xff]
        %v996 = vld [vmem:[%s489 + $0x30] sm:$0xff]
        %v997 = vld [vmem:[%s489 + $0x38] sm:$0xff]
        %v998 = vmul.f32 %v830, %v990
        %v999 = vmul.f32 %v831, %v991
        %v1000 = vmul.f32 %v832, %v992
        %v1001 = vmul.f32 %v833, %v993
        %v1002 = vmul.f32 %v834, %v994
        %v1003 = vmul.f32 %v835, %v995
        %v1004 = vmul.f32 %v836, %v996
        %v1005 = vmul.f32 %v837, %v997
        %vm1006 = vcmp.ne.f32.partialorder %v998, 0.0
        %vm1007 = vcmp.ne.f32.partialorder %v999, 0.0
        %vm1008 = vcmp.ne.f32.partialorder %v1000, 0.0
        %vm1009 = vcmp.ne.f32.partialorder %v1001, 0.0
        %vm1010 = vcmp.ne.f32.partialorder %v1002, 0.0
        %vm1011 = vcmp.ne.f32.partialorder %v1003, 0.0
        %vm1012 = vcmp.ne.f32.partialorder %v1004, 0.0
        %vm1013 = vcmp.ne.f32.partialorder %v1005, 0.0
        %v1014 = vsel %vm1006, %v998, -1e+30
        %v1015 = vsel %vm1007, %v999, -1e+30
        %v1016 = vsel %vm1008, %v1000, -1e+30
        %v1017 = vsel %vm1009, %v1001, -1e+30
        %v1018 = vsel %vm1010, %v1002, -1e+30
        %v1019 = vsel %vm1011, %v1003, -1e+30
        %v1020 = vsel %vm1012, %v1004, -1e+30
        %v1021 = vsel %vm1013, %v1005, -1e+30
        %1022 = vmax.xlane.f32.xlu0 %v1014
        %v1023 = vpop.xlane.xlu0 %1022
        %1024 = vmax.xlane.f32.xlu0 %v1015
        %v1025 = vpop.xlane.xlu0 %1024
        %1026 = vmax.xlane.f32.xlu0 %v1016
        %v1027 = vpop.xlane.xlu0 %1026
        %1028 = vmax.xlane.f32.xlu0 %v1017
        %v1029 = vpop.xlane.xlu0 %1028
        %1030 = vmax.xlane.f32.xlu0 %v1018
        %v1031 = vpop.xlane.xlu0 %1030
        %1032 = vmax.xlane.f32.xlu0 %v1019
        %v1033 = vpop.xlane.xlu0 %1032
        %1034 = vmax.xlane.f32.xlu0 %v1020
        %v1035 = vpop.xlane.xlu0 %1034
        %1036 = vmax.xlane.f32.xlu0 %v1021
        %v1037 = vpop.xlane.xlu0 %1036
        %v1038 = vsub.f32 %v998, %v1023
        %v1039 = vsub.f32 %v999, %v1025
        %v1040 = vsub.f32 %v1000, %v1027
        %v1041 = vsub.f32 %v1001, %v1029
        %v1042 = vsub.f32 %v1002, %v1031
        %v1043 = vsub.f32 %v1003, %v1033
        %v1044 = vsub.f32 %v1004, %v1035
        %v1045 = vsub.f32 %v1005, %v1037
        %v1046 = vmul.f32 %v1038, 1.442695
        %v1047 = vpow.pop %v1046
        %v1048 = vmul.f32 %v1039, 1.442695
        %v1049 = vpow.pop %v1048
        %v1050 = vmul.f32 %v1040, 1.442695
        %v1051 = vpow.pop %v1050
        %v1052 = vmul.f32 %v1041, 1.442695
        %v1053 = vpow.pop %v1052
        %v1054 = vmul.f32 %v1042, 1.442695
        %v1055 = vpow.pop %v1054
        %v1056 = vmul.f32 %v1043, 1.442695
        %v1057 = vpow.pop %v1056
        %v1058 = vmul.f32 %v1044, 1.442695
        %v1059 = vpow.pop %v1058
        %v1060 = vmul.f32 %v1045, 1.442695
        %v1061 = vpow.pop %v1060
        %v1062 = vsel %vm1006, %v1047, 0.0
        %v1063 = vsel %vm1007, %v1049, 0.0
        %v1064 = vsel %vm1008, %v1051, 0.0
        %v1065 = vsel %vm1009, %v1053, 0.0
        %v1066 = vsel %vm1010, %v1055, 0.0
        %v1067 = vsel %vm1011, %v1057, 0.0
        %v1068 = vsel %vm1012, %v1059, 0.0
        %v1069 = vsel %vm1013, %v1061, 0.0
        %1070 = vadd.xlane.f32.xlu0 %v1062
        %v1071 = vpop.xlane.xlu0 %1070
        %1072 = vadd.xlane.f32.xlu0 %v1063
        %v1073 = vpop.xlane.xlu0 %1072
        %1074 = vadd.xlane.f32.xlu0 %v1064
        %v1075 = vpop.xlane.xlu0 %1074
        %1076 = vadd.xlane.f32.xlu0 %v1065
        %v1077 = vpop.xlane.xlu0 %1076
        %1078 = vadd.xlane.f32.xlu0 %v1066
        %v1079 = vpop.xlane.xlu0 %1078
        %1080 = vadd.xlane.f32.xlu0 %v1067
        %v1081 = vpop.xlane.xlu0 %1080
        %1082 = vadd.xlane.f32.xlu0 %v1068
        %v1083 = vpop.xlane.xlu0 %1082
        %1084 = vadd.xlane.f32.xlu0 %v1069
        %v1085 = vpop.xlane.xlu0 %1084
        %v1086 = vmax.f32 %v1071, 1e-30
        %v1087 = vmax.f32 %v1073, 1e-30
        %v1088 = vmax.f32 %v1075, 1e-30
        %v1089 = vmax.f32 %v1077, 1e-30
        %v1090 = vmax.f32 %v1079, 1e-30
        %v1091 = vmax.f32 %v1081, 1e-30
        %v1092 = vmax.f32 %v1083, 1e-30
        %v1093 = vmax.f32 %v1085, 1e-30
        %v1094 = vrcp.pop %v1086
        %v1095 = vrcp.pop %v1087
        %v1096 = vrcp.pop %v1088
        %v1097 = vrcp.pop %v1089
        %v1098 = vrcp.pop %v1090
        %v1099 = vrcp.pop %v1091
        %v1100 = vrcp.pop %v1092
        %v1101 = vrcp.pop %v1093
        %vm1102 = vcmp.gt.f32.partialorder %v1071, 0.0
        %vm1103 = vcmp.gt.f32.partialorder %v1073, 0.0
        %vm1104 = vcmp.gt.f32.partialorder %v1075, 0.0
        %vm1105 = vcmp.gt.f32.partialorder %v1077, 0.0
        %vm1106 = vcmp.gt.f32.partialorder %v1079, 0.0
        %vm1107 = vcmp.gt.f32.partialorder %v1081, 0.0
        %vm1108 = vcmp.gt.f32.partialorder %v1083, 0.0
        %vm1109 = vcmp.gt.f32.partialorder %v1085, 0.0
        %v1110 = vmul.f32 %v1062, %v1094
        %v1111 = vmul.f32 %v1063, %v1095
        %v1112 = vmul.f32 %v1064, %v1096
        %v1113 = vmul.f32 %v1065, %v1097
        %v1114 = vmul.f32 %v1066, %v1098
        %v1115 = vmul.f32 %v1067, %v1099
        %v1116 = vmul.f32 %v1068, %v1100
        %v1117 = vmul.f32 %v1069, %v1101
        %v1118 = vsel %vm1102, 1, 0
        %v1119 = vsel %vm1103, 1, 0
        %v1120 = vsel %vm1104, 1, 0
        %v1121 = vsel %vm1105, 1, 0
        %v1122 = vsel %vm1106, 1, 0
        %v1123 = vsel %vm1107, 1, 0
        %v1124 = vsel %vm1108, 1, 0
        %v1125 = vsel %vm1109, 1, 0
        %vm1126 = vcmp.eq.s32.totalorder %v1118, 1
        %vm1127 = vcmp.eq.s32.totalorder %v1119, 1
        %vm1128 = vcmp.eq.s32.totalorder %v1120, 1
        %vm1129 = vcmp.eq.s32.totalorder %v1121, 1
        %vm1130 = vcmp.eq.s32.totalorder %v1122, 1
        %vm1131 = vcmp.eq.s32.totalorder %v1123, 1
        %vm1132 = vcmp.eq.s32.totalorder %v1124, 1
        %vm1133 = vcmp.eq.s32.totalorder %v1125, 1
        %v1134 = vsel %vm1126, %v1110, 0.0
        %v1135 = vsel %vm1127, %v1111, 0.0
        %v1136 = vsel %vm1128, %v1112, 0.0
        %v1137 = vsel %vm1129, %v1113, 0.0
        %v1138 = vsel %vm1130, %v1114, 0.0
        %v1139 = vsel %vm1131, %v1115, 0.0
        %v1140 = vsel %vm1132, %v1116, 0.0
        %v1141 = vsel %vm1133, %v1117, 0.0
        %1142 = vst [vmem:[%s547] sm:$0xff] %v982
        %1143 = vst [vmem:[%s547 + $0x8] sm:$0xff] %v983
        %1144 = vst [vmem:[%s547 + $0x10] sm:$0xff] %v984
        %1145 = vst [vmem:[%s547 + $0x18] sm:$0xff] %v985
        %1146 = vst [vmem:[%s547 + $0x20] sm:$0xff] %v986
        %1147 = vst [vmem:[%s547 + $0x28] sm:$0xff] %v987
        %1148 = vst [vmem:[%s547 + $0x30] sm:$0xff] %v988
        %1149 = vst [vmem:[%s547 + $0x38] sm:$0xff] %v989
        %1150 = vst [vmem:[%s554] sm:$0xff] %v1134
        %1151 = vst [vmem:[%s554 + $0x8] sm:$0xff] %v1135
        %1152 = vst [vmem:[%s554 + $0x10] sm:$0xff] %v1136
        %1153 = vst [vmem:[%s554 + $0x18] sm:$0xff] %v1137
        %1154 = vst [vmem:[%s554 + $0x20] sm:$0xff] %v1138
        %1155 = vst [vmem:[%s554 + $0x28] sm:$0xff] %v1139
        %1156 = vst [vmem:[%s554 + $0x30] sm:$0xff] %v1140
        %1157 = vst [vmem:[%s554 + $0x38] sm:$0xff] %v1141
        %s1158 = smul.u32 %s41, 2
        %s1159 = smul.u32 %s1158, 16
        %s1160 = scalar_lea.vmem [#allocation6], %s1159
        %v1161 = vld [vmem:[%s1160] sm:$0xff]
        %v1162 = vld [vmem:[%s1160 + $0x8] sm:$0xff]
        %s1163 = scalar_lea.vmem %s9, %s1158
        %v1164 = vld [vmem:[%s1163] sm:$0x1]
        %v1166 = vperm.slane %v1164, 0
        %v1169 = vsel %vm728, %v571, 0
        %v1172 = vsel %vm728, %v572, 0
        %v1175 = vsel %vm728, %v573, 0
        %v1178 = vsel %vm728, %v574, 0
        %v1181 = vsel %vm728, %v575, 0
        %v1184 = vsel %vm728, %v576, 0
        %v1187 = vsel %vm728, %v577, 0
        %v1190 = vsel %vm728, %v578, 0
        %v1193 = vsel %vm728, %v579, 0
        %v1196 = vsel %vm728, %v580, 0
        %v1199 = vsel %vm728, %v581, 0
        %v1202 = vsel %vm728, %v582, 0
        %v1205 = vsel %vm728, %v583, 0
        %v1208 = vsel %vm728, %v584, 0
        %v1211 = vsel %vm728, %v585, 0
        %v1214 = vsel %vm728, %v586, 0
        %1216 = vmatpush.msra.mxu0 0.0
        %1217 = vmatpush.msra.mxu0 0.0
        %1218 = vmatpush.msra.mxu0 0.0
        %1219 = vmatpush.msra.mxu0 0.0
        %1220 = vmatpush.msra.mxu0 0.0
        %1221 = vmatpush.msra.mxu0 0.0
        %1222 = vmatpush.msra.mxu0 0.0
        %1223 = vmatpush.msra.mxu0 0.0
        %1224 = vmatpush.msra.mxu0 0.0
        %1225 = vmatpush.msra.mxu0 0.0
        %1226 = vmatpush.msra.mxu0 0.0
        %1227 = vmatpush.msra.mxu0 0.0
        %1228 = vmatpush.msra.mxu0 0.0
        %1229 = vmatpush.msra.mxu0 0.0
        %1230 = vmatpush.msra.mxu0 %v1162
        %1231 = vmatpush.msra.mxu0 %v1161
        %1232 = vmatmul.f32.gmra.mxu0 %v1169
        %v1233 = vpop.f32.mrf.mxu0
        %v1234 = vadd.f32 %v1166, %v1233
        %1235 = vmatmul.f32.gmra.mxu0 %v1172
        %v1236 = vpop.f32.mrf.mxu0
        %v1237 = vadd.f32 %v1166, %v1236
        %1238 = vmatmul.f32.gmra.mxu0 %v1175
        %v1239 = vpop.f32.mrf.mxu0
        %v1240 = vadd.f32 %v1166, %v1239
        %1241 = vmatmul.f32.gmra.mxu0 %v1178
        %v1242 = vpop.f32.mrf.mxu0
        %v1243 = vadd.f32 %v1166, %v1242
        %1244 = vmatmul.f32.gmra.mxu0 %v1181
        %v1245 = vpop.f32.mrf.mxu0
        %v1246 = vadd.f32 %v1166, %v1245
        %1247 = vmatmul.f32.gmra.mxu0 %v1184
        %v1248 = vpop.f32.mrf.mxu0
        %v1249 = vadd.f32 %v1166, %v1248
        %1250 = vmatmul.f32.gmra.mxu0 %v1187
        %v1251 = vpop.f32.mrf.mxu0
        %v1252 = vadd.f32 %v1166, %v1251
        %1253 = vmatmul.f32.gmra.mxu0 %v1190
        %v1254 = vpop.f32.mrf.mxu0
        %v1255 = vadd.f32 %v1166, %v1254
        %1256 = vmatmul.f32.gmra.mxu0 %v1193
        %v1257 = vpop.f32.mrf.mxu0
        %v1258 = vadd.f32 %v1166, %v1257
        %1259 = vmatmul.f32.gmra.mxu0 %v1196
        %v1260 = vpop.f32.mrf.mxu0
        %v1261 = vadd.f32 %v1166, %v1260
        %1262 = vmatmul.f32.gmra.mxu0 %v1199
        %v1263 = vpop.f32.mrf.mxu0
        %v1264 = vadd.f32 %v1166, %v1263
        %1265 = vmatmul.f32.gmra.mxu0 %v1202
        %v1266 = vpop.f32.mrf.mxu0
        %v1267 = vadd.f32 %v1166, %v1266
        %1268 = vmatmul.f32.gmra.mxu0 %v1205
        %v1269 = vpop.f32.mrf.mxu0
        %v1270 = vadd.f32 %v1166, %v1269
        %1271 = vmatmul.f32.gmra.mxu0 %v1208
        %v1272 = vpop.f32.mrf.mxu0
        %v1273 = vadd.f32 %v1166, %v1272
        %1274 = vmatmul.f32.gmra.mxu0 %v1211
        %v1275 = vpop.f32.mrf.mxu0
        %v1276 = vadd.f32 %v1166, %v1275
        %1277 = vmatmul.f32.gmra.mxu0 %v1214
        %v1278 = vpop.f32.mrf.mxu0
        %v1279 = vadd.f32 %v1166, %v1278
        %1280 = vdwg.mxu0
        %s1281 = sadd.s32 %s1158, 1
        %s1282 = smul.u32 %s1281, 16
        %s1283 = scalar_lea.vmem [#allocation6], %s1282
        %v1284 = vld [vmem:[%s1283] sm:$0xff]
        %v1285 = vld [vmem:[%s1283 + $0x8] sm:$0xff]
        %s1286 = scalar_lea.vmem %s9, %s1281
        %v1287 = vld [vmem:[%s1286] sm:$0x1]
        %v1289 = vperm.slane %v1287, 0
        %1291 = vmatpush.msra.mxu0 0.0
        %1292 = vmatpush.msra.mxu0 0.0
        %1293 = vmatpush.msra.mxu0 0.0
        %1294 = vmatpush.msra.mxu0 0.0
        %1295 = vmatpush.msra.mxu0 0.0
        %1296 = vmatpush.msra.mxu0 0.0
        %1297 = vmatpush.msra.mxu0 0.0
        %1298 = vmatpush.msra.mxu0 0.0
        %1299 = vmatpush.msra.mxu0 0.0
        %1300 = vmatpush.msra.mxu0 0.0
        %1301 = vmatpush.msra.mxu0 0.0
        %1302 = vmatpush.msra.mxu0 0.0
        %1303 = vmatpush.msra.mxu0 0.0
        %1304 = vmatpush.msra.mxu0 0.0
        %1305 = vmatpush.msra.mxu0 %v1285
        %1306 = vmatpush.msra.mxu0 %v1284
        %1307 = vmatmul.f32.gmra.mxu0 %v1169
        %v1308 = vpop.f32.mrf.mxu0
        %v1309 = vadd.f32 %v1289, %v1308
        %1310 = vmatmul.f32.gmra.mxu0 %v1172
        %v1311 = vpop.f32.mrf.mxu0
        %v1312 = vadd.f32 %v1289, %v1311
        %1313 = vmatmul.f32.gmra.mxu0 %v1175
        %v1314 = vpop.f32.mrf.mxu0
        %v1315 = vadd.f32 %v1289, %v1314
        %1316 = vmatmul.f32.gmra.mxu0 %v1178
        %v1317 = vpop.f32.mrf.mxu0
        %v1318 = vadd.f32 %v1289, %v1317
        %1319 = vmatmul.f32.gmra.mxu0 %v1181
        %v1320 = vpop.f32.mrf.mxu0
        %v1321 = vadd.f32 %v1289, %v1320
        %1322 = vmatmul.f32.gmra.mxu0 %v1184
        %v1323 = vpop.f32.mrf.mxu0
        %v1324 = vadd.f32 %v1289, %v1323
        %1325 = vmatmul.f32.gmra.mxu0 %v1187
        %v1326 = vpop.f32.mrf.mxu0
        %v1327 = vadd.f32 %v1289, %v1326
        %1328 = vmatmul.f32.gmra.mxu0 %v1190
        %v1329 = vpop.f32.mrf.mxu0
        %v1330 = vadd.f32 %v1289, %v1329
        %1331 = vmatmul.f32.gmra.mxu0 %v1193
        %v1332 = vpop.f32.mrf.mxu0
        %v1333 = vadd.f32 %v1289, %v1332
        %1334 = vmatmul.f32.gmra.mxu0 %v1196
        %v1335 = vpop.f32.mrf.mxu0
        %v1336 = vadd.f32 %v1289, %v1335
        %1337 = vmatmul.f32.gmra.mxu0 %v1199
        %v1338 = vpop.f32.mrf.mxu0
        %v1339 = vadd.f32 %v1289, %v1338
        %1340 = vmatmul.f32.gmra.mxu0 %v1202
        %v1341 = vpop.f32.mrf.mxu0
        %v1342 = vadd.f32 %v1289, %v1341
        %1343 = vmatmul.f32.gmra.mxu0 %v1205
        %v1344 = vpop.f32.mrf.mxu0
        %v1345 = vadd.f32 %v1289, %v1344
        %1346 = vmatmul.f32.gmra.mxu0 %v1208
        %v1347 = vpop.f32.mrf.mxu0
        %v1348 = vadd.f32 %v1289, %v1347
        %1349 = vmatmul.f32.gmra.mxu0 %v1211
        %v1350 = vpop.f32.mrf.mxu0
        %v1351 = vadd.f32 %v1289, %v1350
        %1352 = vmatmul.f32.gmra.mxu0 %v1214
        %v1353 = vpop.f32.mrf.mxu0
        %v1354 = vadd.f32 %v1289, %v1353
        %1355 = vdwg.mxu0
        %v1356 = vld [vmem:[#allocation2] sm:$0xff]
        %v1357 = vld [vmem:[#allocation2 + $0x8] sm:$0xff]
        %v1358 = vld [vmem:[#allocation2 + $0x10] sm:$0xff]
        %v1359 = vld [vmem:[#allocation2 + $0x18] sm:$0xff]
        %v1360 = vld [vmem:[#allocation2 + $0x20] sm:$0xff]
        %v1361 = vld [vmem:[#allocation2 + $0x28] sm:$0xff]
        %v1362 = vld [vmem:[#allocation2 + $0x30] sm:$0xff]
        %v1363 = vld [vmem:[#allocation2 + $0x38] sm:$0xff]
        %1364 = vmatpush.msra.mxu0 %v1354
        %1365 = vmatpush.msra.mxu0 %v1351
        %1366 = vmatpush.msra.mxu0 %v1348
        %1367 = vmatpush.msra.mxu0 %v1345
        %1368 = vmatpush.msra.mxu0 %v1342
        %1369 = vmatpush.msra.mxu0 %v1339
        %1370 = vmatpush.msra.mxu0 %v1336
        %1371 = vmatpush.msra.mxu0 %v1333
        %1372 = vmatpush.msra.mxu0 %v1330
        %1373 = vmatpush.msra.mxu0 %v1327
        %1374 = vmatpush.msra.mxu0 %v1324
        %1375 = vmatpush.msra.mxu0 %v1321
        %1376 = vmatpush.msra.mxu0 %v1318
        %1377 = vmatpush.msra.mxu0 %v1315
        %1378 = vmatpush.msra.mxu0 %v1312
        %1379 = vmatpush.msra.mxu0 %v1309
        %1380 = vmatmul.f32.gmra.mxu0 %v982
        %v1381 = vpop.f32.mrf.mxu0
        %v1382 = vadd.f32 0.0, %v1381
        %1383 = vmatmul.f32.gmra.mxu0 %v983
        %v1384 = vpop.f32.mrf.mxu0
        %v1385 = vadd.f32 0.0, %v1384
        %1386 = vmatmul.f32.gmra.mxu0 %v984
        %v1387 = vpop.f32.mrf.mxu0
        %v1388 = vadd.f32 0.0, %v1387
        %1389 = vmatmul.f32.gmra.mxu0 %v985
        %v1390 = vpop.f32.mrf.mxu0
        %v1391 = vadd.f32 0.0, %v1390
        %1392 = vmatmul.f32.gmra.mxu0 %v986
        %v1393 = vpop.f32.mrf.mxu0
        %v1394 = vadd.f32 0.0, %v1393
        %1395 = vmatmul.f32.gmra.mxu0 %v987
        %v1396 = vpop.f32.mrf.mxu0
        %v1397 = vadd.f32 0.0, %v1396
        %1398 = vmatmul.f32.gmra.mxu0 %v988
        %v1399 = vpop.f32.mrf.mxu0
        %v1400 = vadd.f32 0.0, %v1399
        %1401 = vmatmul.f32.gmra.mxu0 %v989
        %v1402 = vpop.f32.mrf.mxu0
        %v1403 = vadd.f32 0.0, %v1402
        %1404 = vdwg.mxu0
        %1405 = vmatpush.msra.mxu0 %v1279
        %1406 = vmatpush.msra.mxu0 %v1276
        %1407 = vmatpush.msra.mxu0 %v1273
        %1408 = vmatpush.msra.mxu0 %v1270
        %1409 = vmatpush.msra.mxu0 %v1267
        %1410 = vmatpush.msra.mxu0 %v1264
        %1411 = vmatpush.msra.mxu0 %v1261
        %1412 = vmatpush.msra.mxu0 %v1258
        %1413 = vmatpush.msra.mxu0 %v1255
        %1414 = vmatpush.msra.mxu0 %v1252
        %1415 = vmatpush.msra.mxu0 %v1249
        %1416 = vmatpush.msra.mxu0 %v1246
        %1417 = vmatpush.msra.mxu0 %v1243
        %1418 = vmatpush.msra.mxu0 %v1240
        %1419 = vmatpush.msra.mxu0 %v1237
        %1420 = vmatpush.msra.mxu0 %v1234
        %1421 = vmatmul.f32.gmra.mxu0 %v1134
        %v1422 = vpop.f32.mrf.mxu0
        %v1423 = vadd.f32 %v1382, %v1422
        %1424 = vmatmul.f32.gmra.mxu0 %v1135
        %v1425 = vpop.f32.mrf.mxu0
        %v1426 = vadd.f32 %v1385, %v1425
        %1427 = vmatmul.f32.gmra.mxu0 %v1136
        %v1428 = vpop.f32.mrf.mxu0
        %v1429 = vadd.f32 %v1388, %v1428
        %1430 = vmatmul.f32.gmra.mxu0 %v1137
        %v1431 = vpop.f32.mrf.mxu0
        %v1432 = vadd.f32 %v1391, %v1431
        %1433 = vmatmul.f32.gmra.mxu0 %v1138
        %v1434 = vpop.f32.mrf.mxu0
        %v1435 = vadd.f32 %v1394, %v1434
        %1436 = vmatmul.f32.gmra.mxu0 %v1139
        %v1437 = vpop.f32.mrf.mxu0
        %v1438 = vadd.f32 %v1397, %v1437
        %1439 = vmatmul.f32.gmra.mxu0 %v1140
        %v1440 = vpop.f32.mrf.mxu0
        %v1441 = vadd.f32 %v1400, %v1440
        %1442 = vmatmul.f32.gmra.mxu0 %v1141
        %v1443 = vpop.f32.mrf.mxu0
        %v1444 = vadd.f32 %v1403, %v1443
        %1445 = vdwg.mxu0
        %v1446 = vadd.f32 %v1356, %v1423
        %v1447 = vadd.f32 %v1357, %v1426
        %v1448 = vadd.f32 %v1358, %v1429
        %v1449 = vadd.f32 %v1359, %v1432
        %v1450 = vadd.f32 %v1360, %v1435
        %v1451 = vadd.f32 %v1361, %v1438
        %v1452 = vadd.f32 %v1362, %v1441
        %v1453 = vadd.f32 %v1363, %v1444
        %vm1454 = vcmask 261120
        %1455 = vst.msk [vmem:[#allocation2] sm:$0xff] %vm1454, %v1446
        %1456 = vst.msk [vmem:[#allocation2 + $0x8] sm:$0xff] %vm1454, %v1447
        %1457 = vst.msk [vmem:[#allocation2 + $0x10] sm:$0xff] %vm1454, %v1448
        %1458 = vst.msk [vmem:[#allocation2 + $0x18] sm:$0xff] %vm1454, %v1449
        %1459 = vst.msk [vmem:[#allocation2 + $0x20] sm:$0xff] %vm1454, %v1450
        %1460 = vst.msk [vmem:[#allocation2 + $0x28] sm:$0xff] %vm1454, %v1451
        %1461 = vst.msk [vmem:[#allocation2 + $0x30] sm:$0xff] %vm1454, %v1452
        %1462 = vst.msk [vmem:[#allocation2 + $0x38] sm:$0xff] %vm1454, %v1453
        %p1463 = scmp.eq.s32.totalorder %s41, 3
        // Predicated region
        $region81: #{tpu_custom_call.1} parent=67 // pred_check
          %p1464 = pneg %p1463
        $region82: #{tpu_custom_call.1} parent=67 // pred_check_branch
          %1466 = sbr.rel (%p1464) target = $region84
        $region83: #{tpu_custom_call.1} parent=67 // pred_region
          %v1467 = vld [vmem:[#allocation2] sm:$0xff]
          %v1468 = vld [vmem:[#allocation2 + $0x8] sm:$0xff]
          %v1469 = vld [vmem:[#allocation2 + $0x10] sm:$0xff]
          %v1470 = vld [vmem:[#allocation2 + $0x18] sm:$0xff]
          %v1471 = vld [vmem:[#allocation2 + $0x20] sm:$0xff]
          %v1472 = vld [vmem:[#allocation2 + $0x28] sm:$0xff]
          %v1473 = vld [vmem:[#allocation2 + $0x30] sm:$0xff]
          %v1474 = vld [vmem:[#allocation2 + $0x38] sm:$0xff]
          %1475 = vst.msk [vmem:[%s566] sm:$0xff] %vm1454, %v1467
          %1476 = vst.msk [vmem:[%s566 + $0x8] sm:$0xff] %vm1454, %v1468
          %1477 = vst.msk [vmem:[%s566 + $0x10] sm:$0xff] %vm1454, %v1469
          %1478 = vst.msk [vmem:[%s566 + $0x18] sm:$0xff] %vm1454, %v1470
          %1479 = vst.msk [vmem:[%s566 + $0x20] sm:$0xff] %vm1454, %v1471
          %1480 = vst.msk [vmem:[%s566 + $0x28] sm:$0xff] %vm1454, %v1472
          %1481 = vst.msk [vmem:[%s566 + $0x30] sm:$0xff] %vm1454, %v1473
          %1482 = vst.msk [vmem:[%s566 + $0x38] sm:$0xff] %vm1454, %v1474
        $region84: #{tpu_custom_call.1} parent=67 // pred_fallthru
          _
        %s1483 = smul.u32 8, %s40
        %p1484 = scmp.lt.s32.totalorder %s1483, 15
        %s1485 = scalar_select %p1484, %s1483, 15
        %s1486 = smul.addr %s1485, 8
        %s1487 = scalar_lea.vmem %s12, %s1486
        %s1488 = sand.u32 %s346, 1
        %s1489 = scalar_lea.sflag [#allocation5], %s1488
        %s1490 = sand.u32 %s346, 1
        %s1491 = smul.addr %s1490, 64
        %s1492 = scalar_lea.vmem [#allocation8], %s1491
        %s1493 = sand.u32 %s374, 1
        %s1494 = scalar_lea.sflag [#allocation10], %s1493
        %s1495 = sand.u32 %s374, 1
        %s1496 = smul.addr %s1495, 64
        %s1497 = scalar_lea.vmem [#allocation9], %s1496
        // Predicated region
        $region85: #{tpu_custom_call.1} parent=67 // pred_check
          %p1498 = pneg %p328
        $region86: #{tpu_custom_call.1} parent=67 // pred_check_branch
          %1500 = sbr.rel (%p1498) target = $region88
        $region87: #{tpu_custom_call.1} parent=67 // pred_region
          %s1501 = smul.u32 8, %s40
        $region88: #{tpu_custom_call.1} parent=67 // pred_fallthru
          _
        // Predicated region
        $region89: #{tpu_custom_call.1} parent=67 // pred_check
          %p1502 = pneg %p356
        $region90: #{tpu_custom_call.1} parent=67 // pred_check_branch
          %1504 = sbr.rel (%p1502) target = $region92
        $region91: #{tpu_custom_call.1} parent=67 // pred_region
          %s1505 = smul.u32 8, %s40
          %1507 = vsyncadd %s1489, 0
          %s1508 = smul.addr %s41, 16
          %s1509 = sadd.s32 %s1505, %s1508
          %s1510 = smul.addr %s1509, 8
          %s1511 = scalar_lea.hbm %s13, %s1510
          %s1512 = sshll.u32 %s1492, 4
          %s1513 = int_to_ptr.vmem [resolvable:$true] %s1512
          %s1514 = sshll.u32 %s1511, 4
          %s1515 = int_to_ptr.hbm [resolvable:$true] %s1514
          %1520 = dma.vmem_to_hbm [thread:$0]  %s1513, 1024, %s1515, %s1489, 128, 128, 8
        $region92: #{tpu_custom_call.1} parent=67 // pred_fallthru
          _
        // Predicated region
        $region93: #{tpu_custom_call.1} parent=67 // pred_check
          %p1521 = pneg %p384
        $region94: #{tpu_custom_call.1} parent=67 // pred_check_branch
          %1523 = sbr.rel (%p1521) target = $region96
        $region95: #{tpu_custom_call.1} parent=67 // pred_region
          %s1524 = smul.u32 8, %s40
          %1526 = vsyncadd %s1494, 0
          %s1527 = smul.addr %s41, 16
          %s1528 = sadd.s32 %s1524, %s1527
          %s1529 = smul.addr %s1528, 8
          %s1530 = scalar_lea.hbm %s14, %s1529
          %s1531 = sshll.u32 %s1497, 4
          %s1532 = int_to_ptr.vmem [resolvable:$true] %s1531
          %s1533 = sshll.u32 %s1530, 4
          %s1534 = int_to_ptr.hbm [resolvable:$true] %s1533
          %1539 = dma.vmem_to_hbm [thread:$0]  %s1532, 1024, %s1534, %s1494, 128, 128, 8
        $region96: #{tpu_custom_call.1} parent=67 // pred_fallthru
          _
      $region68: #{tpu_custom_call.1} parent=5 // pred_fallthru
        _
      %p1540 = scmp.le.s32.totalorder 2, %s31
      // Predicated region
      $region97: #{tpu_custom_call.1} parent=5 // pred_check
        %p1541 = pneg %p1540
      $region98: #{tpu_custom_call.1} parent=5 // pred_check_branch
        %1543 = sbr.rel (%p1541) target = $region100
      $region99: #{tpu_custom_call.1} parent=5 // pred_region
        %s1544 = ssub.s32 %s31, 2
        // Predicated region
        $region101: #{tpu_custom_call.1} parent=99 // pred_check
          %p1545 = pneg %p334
        $region102: #{tpu_custom_call.1} parent=99 // pred_check_branch
          %1547 = sbr.rel (%p1545) target = $region104
        $region103: #{tpu_custom_call.1} parent=99 // pred_region
          %s1548 = smul.u32 8, %s42
          %p1549 = scmp.lt.s32.totalorder %s1548, 15
          %s1550 = scalar_select %p1549, %s1548, 15
          %s1551 = smul.addr %s1550, 8
          %s1552 = scalar_lea.vmem %s12, %s1551
        $region104: #{tpu_custom_call.1} parent=99 // pred_fallthru
          _
        // Predicated region
        $region105: #{tpu_custom_call.1} parent=99 // pred_check
          %p1553 = pneg %p362
        $region106: #{tpu_custom_call.1} parent=99 // pred_check_branch
          %1555 = sbr.rel (%p1553) target = $region108
        $region107: #{tpu_custom_call.1} parent=99 // pred_region
          %s1556 = sand.u32 %s347, 1
          %s1557 = scalar_lea.sflag [#allocation5], %s1556
          %s1558 = sand.u32 %s347, 1
          %s1559 = smul.addr %s1558, 64
          %s1560 = scalar_lea.vmem [#allocation8], %s1559
          %1562 = dma.done %s1557, 1024
        $region108: #{tpu_custom_call.1} parent=99 // pred_fallthru
          _
        // Predicated region
        $region109: #{tpu_custom_call.1} parent=99 // pred_check
          %p1563 = pneg %p390
        $region110: #{tpu_custom_call.1} parent=99 // pred_check_branch
          %1565 = sbr.rel (%p1563) target = $region112
        $region111: #{tpu_custom_call.1} parent=99 // pred_region
          %s1566 = sand.u32 %s375, 1
          %s1567 = scalar_lea.sflag [#allocation10], %s1566
          %s1568 = sand.u32 %s375, 1
          %s1569 = smul.addr %s1568, 64
          %s1570 = scalar_lea.vmem [#allocation9], %s1569
          %1572 = dma.done %s1567, 1024
        $region112: #{tpu_custom_call.1} parent=99 // pred_fallthru
          _
      $region100: #{tpu_custom_call.1} parent=5 // pred_fallthru
        _
    $region6: #{tpu_custom_call.1} parent=1 // loop_footer
      %s35 = sadd.s32 1, %s31
    $region7: #{tpu_custom_call.1} parent=1 // loop_footer_branch
      %30 = sbr.rel target = $region3
    $region8: #{tpu_custom_call.1} parent=1 // loop_exit
      _
    %1573 = vsyncpa [#allocation4], 1
    %s1574 = scalar_lea.sflag [#allocation4], 1
    %1575 = vsyncpa %s1574, 1
    %1576 = vsyncpa [#allocation7], 1
    %1577 = vsyncpa [#allocation5], 1
    %s1578 = scalar_lea.sflag [#allocation5], 1
    %1579 = vsyncpa %s1578, 1
    %1580 = vsyncpa [#allocation10], 1
    %s1581 = scalar_lea.sflag [#allocation10], 1
    %1582 = vsyncpa %s1581, 1

</llo_original>
